<compile_context>
chip_gen: v6e
topology: v6e:2x2x1
jax: 0.10.0
libtpu: 0.0.40
codegen_flags: <defaults>
</compile_context>

<pallas_src>
import jax
import jax.numpy as jnp
import numpy as np
from jax.experimental import pallas as pl
from jax.experimental.pallas import tpu as pltpu


# ---------------------------------------------------------------------------
# Helpers
# ---------------------------------------------------------------------------
def _round_up(x, m):
    return ((x + m - 1) // m) * m


def _pad2(a, shape):
    return jnp.pad(a, [(0, s - d) for s, d in zip(shape, a.shape)])


# ---------------------------------------------------------------------------
# Fused multi-layer Pallas kernel (one grid step == one GINEConv+BN+ReLU layer)
# ---------------------------------------------------------------------------
def _mpnn_kernel(src_ref, dst_ref, x_ref, ea_ref,
                 wl_ref, bl_ref, w1_ref, b1_ref, w2_ref, b2_ref,
                 gamma_ref, beta_ref, out_ref, gather_scr, scatter_scr):
    layer = pl.program_id(0)
    n_nodes = x_ref.shape[0]
    n_edges = ea_ref.shape[0]

    # Layer 0: seed the VMEM-resident carry (the output block itself) and build
    # the layer-invariant bf16 one-hot gather/scatter operators exactly once.
    @pl.when(layer == 0)
    def _():
        out_ref[...] = x_ref[...]
        gather_scr[...] = (
            jax.lax.broadcasted_iota(jnp.int32, (n_edges, n_nodes), 1)
            == src_ref[...]).astype(jnp.bfloat16)                    # [E, N]
        scatter_scr[...] = (
            jax.lax.broadcasted_iota(jnp.int32, (n_nodes, n_edges), 0)
            == dst_ref[...]).astype(jnp.bfloat16)                    # [N, E]

    x = out_ref[...]                                                 # [N, P] f32 carry

    # GINEConv.lin: edge_dim -> in_channels (bf16 operands, f32 accumulation)
    e = jnp.dot(ea_ref[...], wl_ref[...],
                preferred_element_type=jnp.float32) + bl_ref[...]    # [E, P]
    # x_j = x[src]  (exact one-hot gather on the MXU)
    xj = jnp.dot(gather_scr[...], x.astype(jnp.bfloat16),
                 preferred_element_type=jnp.float32)                 # [E, P]
    msg = jnp.maximum(xj + e, 0.0)                                   # [E, P] f32
    # aggr_i = sum_{e: dst[e]==i} msg_e  (scatter-add as one-hot matmul)
    aggr = jnp.dot(scatter_scr[...], msg.astype(jnp.bfloat16),
                   preferred_element_type=jnp.float32)               # [N, P]

    # (1 + eps) * x + aggr, eps = 0
    h = x + aggr

    # GINEConv.nn: Linear -> ReLU -> Linear (bf16 operands, f32 accumulation)
    h1 = jnp.maximum(
        jnp.dot(h.astype(jnp.bfloat16), w1_ref[...],
                preferred_element_type=jnp.float32) + b1_ref[...], 0.0)   # [N, P]
    h2 = jnp.dot(h1.astype(jnp.bfloat16), w2_ref[...],
                 preferred_element_type=jnp.float32) + b2_ref[...]        # [N, P]

    # BatchNorm1d (training-mode batch stats, biased var) — single fused f32 pass.
    inv_n = 1.0 / float(n_nodes)
    mean = jnp.sum(h2, axis=0, keepdims=True) * inv_n                # [1, P]
    mean_sq = jnp.sum(h2 * h2, axis=0, keepdims=True) * inv_n        # [1, P]
    var = jnp.maximum(mean_sq - mean * mean, 0.0)                    # clamp cancellation
    scale = gamma_ref[...] * jax.lax.rsqrt(var + 1e-5)
    shift = beta_ref[...] - mean * scale
    y = jnp.maximum(h2 * scale + shift, 0.0)                         # ReLU

    # Carry to next layer; constant output block index -> one HBM writeback total.
    out_ref[...] = y


# ---------------------------------------------------------------------------
# Wrapper: pad to lane-dense widths, stack per-layer params, single pallas_call
# ---------------------------------------------------------------------------
def mpnn_forward(x, edge_index, edge_attr, layer_params, hidden_dim):
    n_nodes, input_dim = x.shape
    n_edges, edge_dim = edge_attr.shape
    num_layers = len(layer_params)

    # Lane-dense padded widths (multiples of 128). Zero padding is exact:
    # padded columns stay identically zero through every layer (weights, biases,
    # gamma and beta are all zero-padded; BN scale of a padded column is 0).
    p = max(_round_up(input_dim, 128), _round_up(hidden_dim, 128))
    ed_p = _round_up(edge_dim, 128)

    x_p = _pad2(x.astype(jnp.float32), (n_nodes, p))                         # f32 carry
    ea_p = _pad2(edge_attr.astype(jnp.float32), (n_edges, ed_p)).astype(jnp.bfloat16)
    src = edge_index[0].astype(jnp.int32).reshape(n_edges, 1)
    dst = edge_index[1].astype(jnp.int32).reshape(1, n_edges)

    # Stack per-layer parameters (zero-padded so every layer maps [P] -> [P]).
    # Matmul operands stored bf16 (halves weight DMA / VMEM); vectors stay f32.
    wl = jnp.stack([_pad2(q["wl"], (ed_p, p)) for q in layer_params]).astype(jnp.bfloat16)
    w1 = jnp.stack([_pad2(q["w1"], (p, p)) for q in layer_params]).astype(jnp.bfloat16)
    w2 = jnp.stack([_pad2(q["w2"], (p, p)) for q in layer_params]).astype(jnp.bfloat16)
    bl = jnp.stack([_pad2(q["bl"], (1, p)) for q in layer_params])
    b1 = jnp.stack([_pad2(q["b1"], (1, p)) for q in layer_params])
    b2 = jnp.stack([_pad2(q["b2"], (1, p)) for q in layer_params])
    gamma = jnp.stack([_pad2(q["gamma"], (1, p)) for q in layer_params])
    beta = jnp.stack([_pad2(q["beta"], (1, p)) for q in layer_params])

    def fixed(shape):            # same block every layer (stays VMEM-resident)
        return pl.BlockSpec(shape, lambda l: (0,) * len(shape))

    def per_layer(shape):        # leading stacked-layer axis selected by index_map
        return pl.BlockSpec((None,) + shape, lambda l: (l,) + (0,) * len(shape))

    # --- cost estimate (per layer) ---
    flops_per_layer = (2 * n_edges * ed_p * p            # edge projection
                       + 4 * n_edges * n_nodes * p       # gather + scatter matmuls
                       + 4 * n_nodes * p * p)            # 2-layer MLP
    bytes_accessed = (4 * 2 * n_nodes * p                # x in + out
                      + 2 * n_edges * ed_p               # edge_attr (bf16)
                      + 4 * 2 * n_edges                  # src/dst
                      + num_layers * (2 * (ed_p * p + 2 * p * p) + 4 * 6 * p))

    # --- VMEM budget: resident set + 50% headroom (floor 32 MiB, cap 64 MiB) ---
    per_layer_w_bytes = (ed_p * p + 2 * p * p) * 2 + 6 * p * 4
    resident_bytes = (
        2 * n_nodes * p * 4                 # x input block (double-buffered)
        + 2 * n_nodes * p * 4               # output block (layer carry)
        + 2 * n_edges * ed_p * 2            # edge_attr block (bf16)
        + 2 * 2 * n_edges * 4               # src/dst index blocks
        + 2 * per_layer_w_bytes             # double-buffered per-layer weights
        + 2 * n_edges * n_nodes * 2         # hoisted bf16 one-hot scratch
        + (3 * n_edges * p + 3 * n_nodes * p) * 4)   # live f32 temporaries
    vmem_limit = min(max(int(resident_bytes * 1.5), 32 * 1024 * 1024),
                     64 * 1024 * 1024)

    out = pl.pallas_call(
        _mpnn_kernel,
        out_shape=jax.ShapeDtypeStruct((n_nodes, p), jnp.float32),
        grid_spec=pltpu.PrefetchScalarGridSpec(
            num_scalar_prefetch=0,
            grid=(num_layers,),
            in_specs=[
                fixed((n_edges, 1)),        # src indices (int32)
                fixed((1, n_edges)),        # dst indices (int32)
                fixed((n_nodes, p)),        # x (padded, f32)
                fixed((n_edges, ed_p)),     # edge_attr (padded, bf16)
                per_layer((ed_p, p)),       # W_lin (bf16)
                per_layer((1, p)),          # b_lin
                per_layer((p, p)),          # W1 (bf16)
                per_layer((1, p)),          # b1
                per_layer((p, p)),          # W2 (bf16)
                per_layer((1, p)),          # b2
                per_layer((1, p)),          # gamma
                per_layer((1, p)),          # beta
            ],
            out_specs=pl.BlockSpec((n_nodes, p), lambda l: (0, 0)),
            scratch_shapes=[
                pltpu.VMEM((n_edges, n_nodes), jnp.bfloat16),   # gather one-hot
                pltpu.VMEM((n_nodes, n_edges), jnp.bfloat16),   # scatter one-hot
            ],
        ),
        compiler_params=pltpu.CompilerParams(
            dimension_semantics=("arbitrary",),   # layer axis is a sequential carry
            vmem_limit_bytes=vmem_limit),
        cost_estimate=pl.CostEstimate(
            flops=num_layers * flops_per_layer,
            transcendentals=num_layers * p,       # rsqrt per channel per layer
            bytes_accessed=bytes_accessed),
        input_output_aliases={2: 0},              # alias padded x onto the output slab
    )(src, dst, x_p, ea_p, wl, bl, w1, b1, w2, b2, gamma, beta)

    return out[:, :hidden_dim]


# ---------------------------------------------------------------------------
# Pure-JAX reference (unpadded). mxu_bf16=True mirrors the kernel's bf16 MXU
# operand casts (accumulation stays f32); mxu_bf16=False is the plain f32 math.
# ---------------------------------------------------------------------------
def mpnn_reference(x, edge_index, edge_attr, layer_params, mxu_bf16=False):
    def cast(a):
        return a.astype(jnp.bfloat16).astype(jnp.float32) if mxu_bf16 else a

    src, dst = edge_index[0], edge_index[1]
    n_nodes = x.shape[0]
    for q in layer_params:
        e = cast(edge_attr) @ cast(q["wl"]) + q["bl"]
        xj = cast(x)[src]
        msg = jnp.maximum(xj + e, 0.0)
        aggr = jnp.zeros((n_nodes, msg.shape[1]), jnp.float32).at[dst].add(cast(msg))
        h = x + aggr
        h1 = jnp.maximum(cast(h) @ cast(q["w1"]) + q["b1"], 0.0)
        h2 = cast(h1) @ cast(q["w2"]) + q["b2"]
        mean = jnp.mean(h2, axis=0, keepdims=True)
        var = jnp.mean((h2 - mean) ** 2, axis=0, keepdims=True)
        y = (h2 - mean) * jax.lax.rsqrt(var + 1e-5) * q["gamma"] + q["beta"]
        x = jnp.maximum(y, 0.0)
    return x


# ---------------------------------------------------------------------------
# Deterministic parameter construction (mirrors MPNN.__init__ shapes)
# ---------------------------------------------------------------------------
def make_params(key, input_dim, hidden_dim, num_layers, edge_dim):
    layer_params = []
    cin = input_dim
    for _ in range(num_layers):
        key, k1, k2, k3, k4, k5, k6 = jax.random.split(key, 7)
        p = {
            # GINEConv.lin : edge_dim -> cin
            "wl": jax.random.normal(k1, (edge_dim, cin), jnp.float32) * 0.1,
            "bl": jax.random.normal(k2, (1, cin), jnp.float32) * 0.1,
            # GINEConv.nn : Linear(cin, hidden) -> ReLU -> Linear(hidden, hidden)
            "w1": jax.random.normal(k3, (cin, hidden_dim), jnp.float32) * 0.1,
            "b1": jax.random.normal(k4, (1, hidden_dim), jnp.float32) * 0.1,
            "w2": jax.random.normal(k5, (hidden_dim, hidden_dim), jnp.float32) * 0.1,
            "b2": jax.random.normal(k6, (1, hidden_dim), jnp.float32) * 0.1,
            # BatchNorm1d(hidden_dim) default init: weight=1, bias=0
            "gamma": jnp.ones((1, hidden_dim), jnp.float32),
            "beta": jnp.zeros((1, hidden_dim), jnp.float32),
        }
        layer_params.append(p)
        cin = hidden_dim
    return layer_params


if __name__ == "__main__":
    # Small synthetic graph: 32 nodes, 64 directed edges.
    N, E = 32, 64
    INPUT_DIM, HIDDEN_DIM, NUM_LAYERS, EDGE_DIM = 16, 32, 2, 8

    key = jax.random.PRNGKey(0)
    kx, ks, kd, ke, kp = jax.random.split(key, 5)

    x = jax.random.normal(kx, (N, INPUT_DIM), jnp.float32)
    src = jax.random.randint(ks, (E,), 0, N, dtype=jnp.int32)
    dst = jax.random.randint(kd, (E,), 0, N, dtype=jnp.int32)
    edge_index = jnp.stack([src, dst], axis=0)                  # [2, E]
    edge_attr = jax.random.normal(ke, (E, EDGE_DIM), jnp.float32)

    layer_params = make_params(kp, INPUT_DIM, HIDDEN_DIM, NUM_LAYERS, EDGE_DIM)

    out = mpnn_forward(x, edge_index, edge_attr, layer_params, HIDDEN_DIM)
    out = jax.block_until_ready(out)
    assert out.shape == (N, HIDDEN_DIM)

    # Tight check against a reference that mirrors the kernel's bf16 MXU operands.
    ref_bf16 = mpnn_reference(x, edge_index, edge_attr, layer_params, mxu_bf16=True)
    assert np.allclose(np.asarray(out), np.asarray(ref_bf16), atol=3e-2, rtol=3e-2)

    # Loose sanity check against the pure-f32 reference (bf16 MXU operands quantize).
    ref_f32 = mpnn_reference(x, edge_index, edge_attr, layer_params, mxu_bf16=False)
    assert np.allclose(np.asarray(out), np.asarray(ref_f32), atol=2.5e-1, rtol=2.5e-1)

    print("KERNEL_OK")
</pallas_src>

<mosaic_0001>
module attributes {stable_mosaic.version = 11 : i64} {
  func.func @_mpnn_kernel(%arg0: i32, %arg1: memref<64x1xi32, #tpu.memory_space<vmem>>, %arg2: memref<1x64xi32, #tpu.memory_space<vmem>>, %arg3: memref<32x128xf32, #tpu.memory_space<vmem>>, %arg4: memref<64x128xbf16, #tpu.memory_space<vmem>>, %arg5: memref<1x128x128xbf16, #tpu.memory_space<vmem>>, %arg6: memref<1x1x128xf32, #tpu.memory_space<vmem>>, %arg7: memref<1x128x128xbf16, #tpu.memory_space<vmem>>, %arg8: memref<1x1x128xf32, #tpu.memory_space<vmem>>, %arg9: memref<1x128x128xbf16, #tpu.memory_space<vmem>>, %arg10: memref<1x1x128xf32, #tpu.memory_space<vmem>>, %arg11: memref<1x1x128xf32, #tpu.memory_space<vmem>>, %arg12: memref<1x1x128xf32, #tpu.memory_space<vmem>>, %arg13: memref<32x128xf32, #tpu.memory_space<vmem>>, %arg14: memref<64x32xbf16, #tpu.memory_space<vmem>>, %arg15: memref<32x64xbf16, #tpu.memory_space<vmem>>) attributes {dimension_semantics = [#tpu.dimension_semantics<arbitrary>], iteration_bounds = array<i64: 2>, scalar_prefetch = 0 : i64, scratch_operands = 2 : i64, tpu.core_type = #tpu.core_type<tc>, window_params = [{pipeline_mode = #tpu.pipeline_mode<synchronous>, transform_indices = @transform_0, window_bounds = array<i64: 64, 1>}, {pipeline_mode = #tpu.pipeline_mode<synchronous>, transform_indices = @transform_1, window_bounds = array<i64: 1, 64>}, {pipeline_mode = #tpu.pipeline_mode<synchronous>, transform_indices = @transform_2, window_bounds = array<i64: 32, 128>}, {pipeline_mode = #tpu.pipeline_mode<synchronous>, transform_indices = @transform_3, window_bounds = array<i64: 64, 128>}, {transform_indices = @transform_4, window_bounds = array<i64: 1, 128, 128>}, {transform_indices = @transform_5, window_bounds = array<i64: 1, 1, 128>}, {transform_indices = @transform_6, window_bounds = array<i64: 1, 128, 128>}, {transform_indices = @transform_7, window_bounds = array<i64: 1, 1, 128>}, {transform_indices = @transform_8, window_bounds = array<i64: 1, 128, 128>}, {transform_indices = @transform_9, window_bounds = array<i64: 1, 1, 128>}, {transform_indices = @transform_10, window_bounds = array<i64: 1, 1, 128>}, {transform_indices = @transform_11, window_bounds = array<i64: 1, 1, 128>}, {pipeline_mode = #tpu.pipeline_mode<synchronous>, transform_indices = @transform_12, window_bounds = array<i64: 32, 128>}]} {
    %c0_i32 = arith.constant 0 : i32
    %0 = arith.cmpi eq, %arg0, %c0_i32 : i32
    %1 = arith.extui %0 : i1 to i32
    %c0_i32_0 = arith.constant 0 : i32
    %2 = arith.cmpi ne, %1, %c0_i32_0 : i32
    scf.if %2 {
      %c0_47 = arith.constant 0 : index
      %c0_48 = arith.constant 0 : index
      %70 = vector.load %arg3[%c0_47, %c0_48] : memref<32x128xf32, #tpu.memory_space<vmem>>, vector<32x128xf32>
      %c0_49 = arith.constant 0 : index
      %c0_50 = arith.constant 0 : index
      %71 = vector.load %arg13[%c0_49, %c0_50] : memref<32x128xf32, #tpu.memory_space<vmem>>, vector<32x128xf32>
      tpu.vector_store %arg13[%c0_49, %c0_50], %70 {strides = array<i32>} : memref<32x128xf32, #tpu.memory_space<vmem>>, vector<32x128xf32>,
      %72 = tpu.iota {dimensions = array<i32: 1>} : vector<64x32xi32>
      %c0_51 = arith.constant 0 : index
      %c0_52 = arith.constant 0 : index
      %73 = vector.load %arg1[%c0_51, %c0_52] : memref<64x1xi32, #tpu.memory_space<vmem>>, vector<64x1xi32>
      %74 = vector.broadcast %73 : vector<64x1xi32> to vector<64x32xi32>
      %75 = arith.cmpi eq, %72, %74 : vector<64x32xi32>
      %76 = arith.extui %75 : vector<64x32xi1> to vector<64x32xi32>
      %77 = arith.sitofp %76 : vector<64x32xi32> to vector<64x32xf32>
      %78 = arith.truncf %77 : vector<64x32xf32> to vector<64x32xbf16>
      %c0_53 = arith.constant 0 : index
      %c0_54 = arith.constant 0 : index
      %79 = vector.load %arg14[%c0_53, %c0_54] : memref<64x32xbf16, #tpu.memory_space<vmem>>, vector<64x32xbf16>
      tpu.vector_store %arg14[%c0_53, %c0_54], %78 {strides = array<i32>} : memref<64x32xbf16, #tpu.memory_space<vmem>>, vector<64x32xbf16>,
      %80 = tpu.iota {dimensions = array<i32: 0>} : vector<32x64xi32>
      %c0_55 = arith.constant 0 : index
      %c0_56 = arith.constant 0 : index
      %81 = vector.load %arg2[%c0_55, %c0_56] : memref<1x64xi32, #tpu.memory_space<vmem>>, vector<1x64xi32>
      %82 = vector.broadcast %81 : vector<1x64xi32> to vector<32x64xi32>
      %83 = arith.cmpi eq, %80, %82 : vector<32x64xi32>
      %84 = arith.extui %83 : vector<32x64xi1> to vector<32x64xi32>
      %85 = arith.sitofp %84 : vector<32x64xi32> to vector<32x64xf32>
      %86 = arith.truncf %85 : vector<32x64xf32> to vector<32x64xbf16>
      %c0_57 = arith.constant 0 : index
      %c0_58 = arith.constant 0 : index
      %87 = vector.load %arg15[%c0_57, %c0_58] : memref<32x64xbf16, #tpu.memory_space<vmem>>, vector<32x64xbf16>
      tpu.vector_store %arg15[%c0_57, %c0_58], %86 {strides = array<i32>} : memref<32x64xbf16, #tpu.memory_space<vmem>>, vector<32x64xbf16>,
    } else {
    }
    %c0 = arith.constant 0 : index
    %c0_1 = arith.constant 0 : index
    %3 = vector.load %arg13[%c0, %c0_1] : memref<32x128xf32, #tpu.memory_space<vmem>>, vector<32x128xf32>
    %c0_2 = arith.constant 0 : index
    %c0_3 = arith.constant 0 : index
    %4 = vector.load %arg4[%c0_2, %c0_3] : memref<64x128xbf16, #tpu.memory_space<vmem>>, vector<64x128xbf16>
    %c0_4 = arith.constant 0 : index
    %c0_5 = arith.constant 0 : index
    %c0_6 = arith.constant 0 : index
    %5 = vector.load %arg5[%c0_4, %c0_5, %c0_6] : memref<1x128x128xbf16, #tpu.memory_space<vmem>>, vector<1x128x128xbf16>
    %6 = vector.shape_cast %5 : vector<1x128x128xbf16> to vector<128x128xbf16>
    %cst = arith.constant dense<0.000000e+00> : vector<64x128xf32>
    %7 = tpu.matmul %4, %6, %cst {dimension_numbers = #tpu.dot_dimension_numbers<[1], [0], [0], [1], [0, 0, 1, 1], [], []>} : vector<64x128xbf16>, vector<128x128xbf16>, vector<64x128xf32> -> vector<64x128xf32>
    %c0_7 = arith.constant 0 : index
    %c0_8 = arith.constant 0 : index
    %c0_9 = arith.constant 0 : index
    %8 = vector.load %arg6[%c0_7, %c0_8, %c0_9] : memref<1x1x128xf32, #tpu.memory_space<vmem>>, vector<1x1x128xf32>
    %9 = vector.shape_cast %8 : vector<1x1x128xf32> to vector<1x128xf32>
    %10 = vector.broadcast %9 : vector<1x128xf32> to vector<64x128xf32>
    %11 = arith.addf %7, %10 : vector<64x128xf32>
    %c0_10 = arith.constant 0 : index
    %c0_11 = arith.constant 0 : index
    %12 = vector.load %arg14[%c0_10, %c0_11] : memref<64x32xbf16, #tpu.memory_space<vmem>>, vector<64x32xbf16>
    %13 = arith.truncf %3 : vector<32x128xf32> to vector<32x128xbf16>
    %cst_12 = arith.constant dense<0.000000e+00> : vector<64x128xf32>
    %14 = tpu.matmul %12, %13, %cst_12 {dimension_numbers = #tpu.dot_dimension_numbers<[1], [0], [0], [1], [0, 0, 1, 1], [], []>} : vector<64x32xbf16>, vector<32x128xbf16>, vector<64x128xf32> -> vector<64x128xf32>
    %15 = arith.addf %14, %11 : vector<64x128xf32>
    %cst_13 = arith.constant 0.000000e+00 : f32
    %16 = vector.broadcast %cst_13 : f32 to vector<64x128xf32>
    %17 = arith.maximumf %15, %16 : vector<64x128xf32>
    %c0_14 = arith.constant 0 : index
    %c0_15 = arith.constant 0 : index
    %18 = vector.load %arg15[%c0_14, %c0_15] : memref<32x64xbf16, #tpu.memory_space<vmem>>, vector<32x64xbf16>
    %19 = arith.truncf %17 : vector<64x128xf32> to vector<64x128xbf16>
    %cst_16 = arith.constant dense<0.000000e+00> : vector<32x128xf32>
    %20 = tpu.matmul %18, %19, %cst_16 {dimension_numbers = #tpu.dot_dimension_numbers<[1], [0], [0], [1], [0, 0, 1, 1], [], []>} : vector<32x64xbf16>, vector<64x128xbf16>, vector<32x128xf32> -> vector<32x128xf32>
    %21 = arith.addf %3, %20 : vector<32x128xf32>
    %22 = arith.truncf %21 : vector<32x128xf32> to vector<32x128xbf16>
    %c0_17 = arith.constant 0 : index
    %c0_18 = arith.constant 0 : index
    %c0_19 = arith.constant 0 : index
    %23 = vector.load %arg7[%c0_17, %c0_18, %c0_19] : memref<1x128x128xbf16, #tpu.memory_space<vmem>>, vector<1x128x128xbf16>
    %24 = vector.shape_cast %23 : vector<1x128x128xbf16> to vector<128x128xbf16>
    %cst_20 = arith.constant dense<0.000000e+00> : vector<32x128xf32>
    %25 = tpu.matmul %22, %24, %cst_20 {dimension_numbers = #tpu.dot_dimension_numbers<[1], [0], [0], [1], [0, 0, 1, 1], [], []>} : vector<32x128xbf16>, vector<128x128xbf16>, vector<32x128xf32> -> vector<32x128xf32>
    %c0_21 = arith.constant 0 : index
    %c0_22 = arith.constant 0 : index
    %c0_23 = arith.constant 0 : index
    %26 = vector.load %arg8[%c0_21, %c0_22, %c0_23] : memref<1x1x128xf32, #tpu.memory_space<vmem>>, vector<1x1x128xf32>
    %27 = vector.shape_cast %26 : vector<1x1x128xf32> to vector<1x128xf32>
    %28 = vector.broadcast %27 : vector<1x128xf32> to vector<32x128xf32>
    %29 = arith.addf %25, %28 : vector<32x128xf32>
    %cst_24 = arith.constant 0.000000e+00 : f32
    %30 = vector.broadcast %cst_24 : f32 to vector<32x128xf32>
    %31 = arith.maximumf %29, %30 : vector<32x128xf32>
    %32 = arith.truncf %31 : vector<32x128xf32> to vector<32x128xbf16>
    %c0_25 = arith.constant 0 : index
    %c0_26 = arith.constant 0 : index
    %c0_27 = arith.constant 0 : index
    %33 = vector.load %arg9[%c0_25, %c0_26, %c0_27] : memref<1x128x128xbf16, #tpu.memory_space<vmem>>, vector<1x128x128xbf16>
    %34 = vector.shape_cast %33 : vector<1x128x128xbf16> to vector<128x128xbf16>
    %cst_28 = arith.constant dense<0.000000e+00> : vector<32x128xf32>
    %35 = tpu.matmul %32, %34, %cst_28 {dimension_numbers = #tpu.dot_dimension_numbers<[1], [0], [0], [1], [0, 0, 1, 1], [], []>} : vector<32x128xbf16>, vector<128x128xbf16>, vector<32x128xf32> -> vector<32x128xf32>
    %c0_29 = arith.constant 0 : index
    %c0_30 = arith.constant 0 : index
    %c0_31 = arith.constant 0 : index
    %36 = vector.load %arg10[%c0_29, %c0_30, %c0_31] : memref<1x1x128xf32, #tpu.memory_space<vmem>>, vector<1x1x128xf32>
    %37 = vector.shape_cast %36 : vector<1x1x128xf32> to vector<1x128xf32>
    %38 = vector.broadcast %37 : vector<1x128xf32> to vector<32x128xf32>
    %39 = arith.addf %35, %38 : vector<32x128xf32>
    %cst_32 = arith.constant dense<0.000000e+00> : vector<128xf32>
    %40 = vector.multi_reduction <add>, %39, %cst_32 [0] : vector<32x128xf32> to vector<128xf32>
    %41 = vector.shape_cast %40 : vector<128xf32> to vector<1x128xf32>
    %cst_33 = arith.constant 3.125000e-02 : f32
    %42 = vector.broadcast %cst_33 : f32 to vector<1x128xf32>
    %43 = arith.mulf %41, %42 : vector<1x128xf32>
    %44 = arith.mulf %39, %39 : vector<32x128xf32>
    %cst_34 = arith.constant dense<0.000000e+00> : vector<128xf32>
    %45 = vector.multi_reduction <add>, %44, %cst_34 [0] : vector<32x128xf32> to vector<128xf32>
    %46 = vector.shape_cast %45 : vector<128xf32> to vector<1x128xf32>
    %cst_35 = arith.constant 3.125000e-02 : f32
    %47 = vector.broadcast %cst_35 : f32 to vector<1x128xf32>
    %48 = arith.mulf %46, %47 : vector<1x128xf32>
    %49 = arith.mulf %43, %43 : vector<1x128xf32>
    %50 = arith.subf %48, %49 : vector<1x128xf32>
    %cst_36 = arith.constant 0.000000e+00 : f32
    %51 = vector.broadcast %cst_36 : f32 to vector<1x128xf32>
    %52 = arith.maximumf %50, %51 : vector<1x128xf32>
    %c0_37 = arith.constant 0 : index
    %c0_38 = arith.constant 0 : index
    %c0_39 = arith.constant 0 : index
    %53 = vector.load %arg11[%c0_37, %c0_38, %c0_39] : memref<1x1x128xf32, #tpu.memory_space<vmem>>, vector<1x1x128xf32>
    %54 = vector.shape_cast %53 : vector<1x1x128xf32> to vector<1x128xf32>
    %cst_40 = arith.constant 9.99999974E-6 : f32
    %55 = vector.broadcast %cst_40 : f32 to vector<1x128xf32>
    %56 = arith.addf %52, %55 : vector<1x128xf32>
    %57 = math.rsqrt %56 : vector<1x128xf32>
    %58 = arith.mulf %54, %57 : vector<1x128xf32>
    %c0_41 = arith.constant 0 : index
    %c0_42 = arith.constant 0 : index
    %c0_43 = arith.constant 0 : index
    %59 = vector.load %arg12[%c0_41, %c0_42, %c0_43] : memref<1x1x128xf32, #tpu.memory_space<vmem>>, vector<1x1x128xf32>
    %60 = vector.shape_cast %59 : vector<1x1x128xf32> to vector<1x128xf32>
    %61 = arith.mulf %43, %58 : vector<1x128xf32>
    %62 = arith.subf %60, %61 : vector<1x128xf32>
    %63 = vector.broadcast %58 : vector<1x128xf32> to vector<32x128xf32>
    %64 = arith.mulf %39, %63 : vector<32x128xf32>
    %65 = vector.broadcast %62 : vector<1x128xf32> to vector<32x128xf32>
    %66 = arith.addf %64, %65 : vector<32x128xf32>
    %cst_44 = arith.constant 0.000000e+00 : f32
    %67 = vector.broadcast %cst_44 : f32 to vector<32x128xf32>
    %68 = arith.maximumf %66, %67 : vector<32x128xf32>
    %c0_45 = arith.constant 0 : index
    %c0_46 = arith.constant 0 : index
    %69 = vector.load %arg13[%c0_45, %c0_46] : memref<32x128xf32, #tpu.memory_space<vmem>>, vector<32x128xf32>
    tpu.vector_store %arg13[%c0_45, %c0_46], %68 {strides = array<i32>} : memref<32x128xf32, #tpu.memory_space<vmem>>, vector<32x128xf32>,
    return
  }
  func.func @transform_0(%arg0: i32) -> (i32, i32) {
    %c0_i32 = arith.constant 0 : i32
    %c0_i32_0 = arith.constant 0 : i32
    %c0_i32_1 = arith.constant 0 : i32
    return %c0_i32, %c0_i32_0 : i32, i32
  }
  func.func @transform_1(%arg0: i32) -> (i32, i32) {
    %c0_i32 = arith.constant 0 : i32
    %c0_i32_0 = arith.constant 0 : i32
    %c0_i32_1 = arith.constant 0 : i32
    return %c0_i32, %c0_i32_0 : i32, i32
  }
  func.func @transform_2(%arg0: i32) -> (i32, i32) {
    %c0_i32 = arith.constant 0 : i32
    %c0_i32_0 = arith.constant 0 : i32
    %c0_i32_1 = arith.constant 0 : i32
    return %c0_i32, %c0_i32_0 : i32, i32
  }
  func.func @transform_3(%arg0: i32) -> (i32, i32) {
    %c0_i32 = arith.constant 0 : i32
    %c0_i32_0 = arith.constant 0 : i32
    %c0_i32_1 = arith.constant 0 : i32
    return %c0_i32, %c0_i32_0 : i32, i32
  }
  func.func @transform_4(%arg0: i32) -> (i32, i32, i32) {
    %c0_i32 = arith.constant 0 : i32
    %c0_i32_0 = arith.constant 0 : i32
    %c0_i32_1 = arith.constant 0 : i32
    return %arg0, %c0_i32, %c0_i32_0 : i32, i32, i32
  }
  func.func @transform_5(%arg0: i32) -> (i32, i32, i32) {
    %c0_i32 = arith.constant 0 : i32
    %c0_i32_0 = arith.constant 0 : i32
    %c0_i32_1 = arith.constant 0 : i32
    return %arg0, %c0_i32, %c0_i32_0 : i32, i32, i32
  }
  func.func @transform_6(%arg0: i32) -> (i32, i32, i32) {
    %c0_i32 = arith.constant 0 : i32
    %c0_i32_0 = arith.constant 0 : i32
    %c0_i32_1 = arith.constant 0 : i32
    return %arg0, %c0_i32, %c0_i32_0 : i32, i32, i32
  }
  func.func @transform_7(%arg0: i32) -> (i32, i32, i32) {
    %c0_i32 = arith.constant 0 : i32
    %c0_i32_0 = arith.constant 0 : i32
    %c0_i32_1 = arith.constant 0 : i32
    return %arg0, %c0_i32, %c0_i32_0 : i32, i32, i32
  }
  func.func @transform_8(%arg0: i32) -> (i32, i32, i32) {
    %c0_i32 = arith.constant 0 : i32
    %c0_i32_0 = arith.constant 0 : i32
    %c0_i32_1 = arith.constant 0 : i32
    return %arg0, %c0_i32, %c0_i32_0 : i32, i32, i32
  }
  func.func @transform_9(%arg0: i32) -> (i32, i32, i32) {
    %c0_i32 = arith.constant 0 : i32
    %c0_i32_0 = arith.constant 0 : i32
    %c0_i32_1 = arith.constant 0 : i32
    return %arg0, %c0_i32, %c0_i32_0 : i32, i32, i32
  }
  func.func @transform_10(%arg0: i32) -> (i32, i32, i32) {
    %c0_i32 = arith.constant 0 : i32
    %c0_i32_0 = arith.constant 0 : i32
    %c0_i32_1 = arith.constant 0 : i32
    return %arg0, %c0_i32, %c0_i32_0 : i32, i32, i32
  }
  func.func @transform_11(%arg0: i32) -> (i32, i32, i32) {
    %c0_i32 = arith.constant 0 : i32
    %c0_i32_0 = arith.constant 0 : i32
    %c0_i32_1 = arith.constant 0 : i32
    return %arg0, %c0_i32, %c0_i32_0 : i32, i32, i32
  }
  func.func @transform_12(%arg0: i32) -> (i32, i32) {
    %c0_i32 = arith.constant 0 : i32
    %c0_i32_0 = arith.constant 0 : i32
    %c0_i32_1 = arith.constant 0 : i32
    return %c0_i32, %c0_i32_0 : i32, i32
  }
}

</mosaic_0001>

<llo_original>
// kernel: tpu_custom_call.1
$region0: #{tpu_custom_call.1}
  #allocation0 [shape = 'u32[]', space=smem, size = 0x4, offset = 0x4, fixed_abs, tag = 'smem constant byte address 0x4 - core index']
  #allocation1 [shape = 'u32[144,128]{1,0:T(1,128)}', space=vmem, size = 0x12000, scoped, tag = 'internal scratch']
  #allocation2 [shape = 'bf16[64,32]{1,0:T(8,128)(2,1)}', space=vmem, size = 0x4000, scoped, tag = 'scratch operand']
  #allocation3 [shape = 'bf16[32,64]{1,0:T(8,128)(2,1)}', space=vmem, size = 0x2000, scoped, tag = 'scratch operand']
  %s0 = inlined_call_operand.vmem [shape: s32[64,1], index: 0, kind: input, shape index: {}]
  %s1 = inlined_call_operand.vmem [shape: s32[1,64], index: 1, kind: input, shape index: {}]
  %s2 = inlined_call_operand.hbm [shape: f32[32,128], index: 2, kind: input, shape index: {}, may-alias: {2,12}]
  %s3 = inlined_call_operand.hbm [shape: bf16[64,128], index: 3, kind: input, shape index: {}]
  %s4 = inlined_call_operand.vmem [shape: bf16[2,128,128], index: 4, kind: input, shape index: {}]
  %s5 = inlined_call_operand.vmem [shape: f32[2,1,128], index: 5, kind: input, shape index: {}]
  %s6 = inlined_call_operand.hbm [shape: bf16[2,128,128], index: 6, kind: input, shape index: {}]
  %s7 = inlined_call_operand.vmem [shape: f32[2,1,128], index: 7, kind: input, shape index: {}]
  %s8 = inlined_call_operand.hbm [shape: bf16[2,128,128], index: 8, kind: input, shape index: {}]
  %s9 = inlined_call_operand.vmem [shape: f32[2,1,128], index: 9, kind: input, shape index: {}]
  %s10 = inlined_call_operand.vmem [shape: f32[2,1,128], index: 10, kind: input, shape index: {}]
  %s11 = inlined_call_operand.vmem [shape: f32[2,1,128], index: 11, kind: input, shape index: {}]
  %s12 = inlined_call_operand.hbm [shape: f32[32,128], index: 12, kind: output, shape index: {}, may-alias: {2,12}]
  %s13 = sld [smem:[#allocation0]]
  $region101: #{tpu_custom_call.1} parent=0
    _
  %s15 = ssub.s32 1, %s13
  %s16 = scalar_select 0, %s15, %s13
  $region1: #{tpu_custom_call.1} parent=0
    #allocation4 [shape = 'u8[16384]{0}', space=vmem, size = 0x4000, scoped, tag = 'input window, operand 2, single buffered']
    #allocation5 [shape = 's32[2]{0}', space=sflag, size = 0x8, scoped, tag = 'scoped memory for tpu_custom_call.1']
    #allocation6 [shape = 's32[2]{0}', space=sflag, size = 0x8, scoped, tag = 'scoped memory for tpu_custom_call.1']
    #allocation7 [shape = 'u8[16384]{0}', space=vmem, size = 0x4000, scoped, tag = 'input window, operand 3, single buffered']
    #allocation8 [shape = 's32[1]{0}', space=sflag, size = 0x4, scoped, tag = 'scoped memory for tpu_custom_call.1']
    #allocation9 [shape = 'u8[65536]{0}', space=vmem, size = 0x10000, scoped, tag = 'input window, operand 6']
    #allocation10 [shape = 'u8[65536]{0}', space=vmem, size = 0x10000, scoped, tag = 'input window, operand 8']
    #allocation11 [shape = 'u8[16384]{0}', space=vmem, size = 0x4000, scoped, tag = 'output window, operand 0, single buffered']
    %17 = vsyncpa [#allocation5], 0
    %18 = vsyncpa [#allocation8], 0
    %19 = vsyncpa [#allocation6], 0
    loop: start=0, step=1, limit=4
    $region2: #{tpu_custom_call.1} parent=1 // loop_pre_header
      _
    $region3: #{tpu_custom_call.1} parent=1 // loop_header
      %s21 = sphi 0, %s25
      %p22 = scmp.ge.s32.totalorder %s21, 4
      %s29 = sphi 0, %s29
      %s31 = sphi 0, %s29
      %s32 = sphi 0, %s31
      %s46 = sphi 0, %s32
      %s50 = sphi 0, %s50
      %s52 = sphi 0, %s50
      %s53 = sphi 0, %s52
      %s67 = sphi 0, %s53
      %s71 = sphi 0, %s71
      %s73 = sphi 0, %s71
      %s74 = sphi 0, %s73
      %s88 = sphi 0, %s74
      %s92 = sphi 0, %s92
      %s94 = sphi 0, %s92
      %s95 = sphi 0, %s94
      %s109 = sphi 0, %s95
      %s115 = sphi 0, %s117
      %s118 = sphi 0, %s115
      %s119 = sphi 0, %s118
      %s135 = sphi 0, %s119
      %s141 = sphi 0, %s143
      %s144 = sphi 0, %s141
      %s145 = sphi 0, %s144
      %s161 = sphi 0, %s145
      %s167 = sphi 0, %s169
      %s170 = sphi 0, %s167
      %s171 = sphi 0, %s170
      %s187 = sphi 0, %s171
      %s193 = sphi 0, %s195
      %s196 = sphi 0, %s193
      %s197 = sphi 0, %s196
      %s213 = sphi 0, %s197
      %s219 = sphi 0, %s221
      %s222 = sphi 0, %s219
      %s223 = sphi 0, %s222
      %s239 = sphi 0, %s223
      %s245 = sphi 0, %s247
      %s248 = sphi 0, %s245
      %s249 = sphi 0, %s248
      %s265 = sphi 0, %s249
      %s271 = sphi 0, %s273
      %s274 = sphi 0, %s271
      %s275 = sphi 0, %s274
      %s291 = sphi 0, %s275
      %s297 = sphi 0, %s299
      %s300 = sphi 0, %s297
      %s301 = sphi 0, %s300
      %s317 = sphi 0, %s301
      %s321 = sphi 0, %s321
      %s323 = sphi 0, %s321
      %s324 = sphi 0, %s323
      %s338 = sphi 0, %s324
    $region4: #{tpu_custom_call.1} parent=1 // loop_header_branch
      %24 = sbr.rel (%p22) target = $region8
    $region5: #{tpu_custom_call.1} parent=1 // loop_body
      %s26 = ssub.s32 %s21, 1
      %s27 = ssub.s32 %s21, 2
      %s28 = sadd.s32 %s21, 1
      %s30 = sadd.s32 %s29, 1
      %p33 = scmp.eq.s32.totalorder %s21, 1
      %p34 = scmp.ne.s32.totalorder %s29, %s31
      %p35 = scmp.eq.s32.totalorder %s21, 0
      %p36 = por %p34, %p35
      %p37 = scmp.ne.s32.totalorder %s29, %s31
      %p38 = scmp.eq.s32.totalorder %s26, 1
      %p39 = por %p37, %p38
      %p40 = scmp.ne.s32.totalorder %s31, %s32
      %p41 = scmp.eq.s32.totalorder %s26, 0
      %p42 = por %p40, %p41
      %p43 = scmp.ne.s32.totalorder %s31, %s32
      %p44 = scmp.eq.s32.totalorder %s27, 1
      %p45 = por %p43, %p44
      %p47 = scmp.ne.s32.totalorder %s32, %s46
      %p48 = scmp.eq.s32.totalorder %s27, 0
      %p49 = por %p47, %p48
      %s51 = sadd.s32 %s50, 1
      %p54 = scmp.eq.s32.totalorder %s21, 1
      %p55 = scmp.ne.s32.totalorder %s50, %s52
      %p56 = scmp.eq.s32.totalorder %s21, 0
      %p57 = por %p55, %p56
      %p58 = scmp.ne.s32.totalorder %s50, %s52
      %p59 = scmp.eq.s32.totalorder %s26, 1
      %p60 = por %p58, %p59
      %p61 = scmp.ne.s32.totalorder %s52, %s53
      %p62 = scmp.eq.s32.totalorder %s26, 0
      %p63 = por %p61, %p62
      %p64 = scmp.ne.s32.totalorder %s52, %s53
      %p65 = scmp.eq.s32.totalorder %s27, 1
      %p66 = por %p64, %p65
      %p68 = scmp.ne.s32.totalorder %s53, %s67
      %p69 = scmp.eq.s32.totalorder %s27, 0
      %p70 = por %p68, %p69
      %s72 = sadd.s32 %s71, 1
      %p75 = scmp.eq.s32.totalorder %s21, 1
      %p76 = scmp.ne.s32.totalorder %s71, %s73
      %p77 = scmp.eq.s32.totalorder %s21, 0
      %p78 = por %p76, %p77
      %p79 = scmp.ne.s32.totalorder %s71, %s73
      %p80 = scmp.eq.s32.totalorder %s26, 1
      %p81 = por %p79, %p80
      %p82 = scmp.ne.s32.totalorder %s73, %s74
      %p83 = scmp.eq.s32.totalorder %s26, 0
      %p84 = por %p82, %p83
      %p85 = scmp.ne.s32.totalorder %s73, %s74
      %p86 = scmp.eq.s32.totalorder %s27, 1
      %p87 = por %p85, %p86
      %p89 = scmp.ne.s32.totalorder %s74, %s88
      %p90 = scmp.eq.s32.totalorder %s27, 0
      %p91 = por %p89, %p90
      %s93 = sadd.s32 %s92, 1
      %p96 = scmp.eq.s32.totalorder %s21, 1
      %p97 = scmp.ne.s32.totalorder %s92, %s94
      %p98 = scmp.eq.s32.totalorder %s21, 0
      %p99 = por %p97, %p98
      %p100 = scmp.ne.s32.totalorder %s92, %s94
      %p101 = scmp.eq.s32.totalorder %s26, 1
      %p102 = por %p100, %p101
      %p103 = scmp.ne.s32.totalorder %s94, %s95
      %p104 = scmp.eq.s32.totalorder %s26, 0
      %p105 = por %p103, %p104
      %p106 = scmp.ne.s32.totalorder %s94, %s95
      %p107 = scmp.eq.s32.totalorder %s27, 1
      %p108 = por %p106, %p107
      %p110 = scmp.ne.s32.totalorder %s95, %s109
      %p111 = scmp.eq.s32.totalorder %s27, 0
      %p112 = por %p110, %p111
      %s113 = ssub.s32 %s21, %s28
      %p114 = scmp.eq.s32.totalorder %s113, 0
      %s116 = sadd.s32 %s115, 1
      %s117 = scalar_select %p114, %s115, %s116
      %p120 = pneg %p114
      %p121 = scmp.eq.s32.totalorder %s21, 1
      %p122 = por %p120, %p121
      %p123 = scmp.ne.s32.totalorder %s115, %s118
      %p124 = scmp.eq.s32.totalorder %s21, 0
      %p125 = por %p123, %p124
      %p126 = scmp.ne.s32.totalorder %s115, %s118
      %p127 = scmp.eq.s32.totalorder %s26, 1
      %p128 = por %p126, %p127
      %p129 = scmp.ne.s32.totalorder %s118, %s119
      %p130 = scmp.eq.s32.totalorder %s26, 0
      %p131 = por %p129, %p130
      %p132 = scmp.ne.s32.totalorder %s118, %s119
      %p133 = scmp.eq.s32.totalorder %s27, 1
      %p134 = por %p132, %p133
      %p136 = scmp.ne.s32.totalorder %s119, %s135
      %p137 = scmp.eq.s32.totalorder %s27, 0
      %p138 = por %p136, %p137
      %s139 = ssub.s32 %s21, %s28
      %p140 = scmp.eq.s32.totalorder %s139, 0
      %s142 = sadd.s32 %s141, 1
      %s143 = scalar_select %p140, %s141, %s142
      %p146 = pneg %p140
      %p147 = scmp.eq.s32.totalorder %s21, 1
      %p148 = por %p146, %p147
      %p149 = scmp.ne.s32.totalorder %s141, %s144
      %p150 = scmp.eq.s32.totalorder %s21, 0
      %p151 = por %p149, %p150
      %p152 = scmp.ne.s32.totalorder %s141, %s144
      %p153 = scmp.eq.s32.totalorder %s26, 1
      %p154 = por %p152, %p153
      %p155 = scmp.ne.s32.totalorder %s144, %s145
      %p156 = scmp.eq.s32.totalorder %s26, 0
      %p157 = por %p155, %p156
      %p158 = scmp.ne.s32.totalorder %s144, %s145
      %p159 = scmp.eq.s32.totalorder %s27, 1
      %p160 = por %p158, %p159
      %p162 = scmp.ne.s32.totalorder %s145, %s161
      %p163 = scmp.eq.s32.totalorder %s27, 0
      %p164 = por %p162, %p163
      %s165 = ssub.s32 %s21, %s28
      %p166 = scmp.eq.s32.totalorder %s165, 0
      %s168 = sadd.s32 %s167, 1
      %s169 = scalar_select %p166, %s167, %s168
      %p172 = pneg %p166
      %p173 = scmp.eq.s32.totalorder %s21, 1
      %p174 = por %p172, %p173
      %p175 = scmp.ne.s32.totalorder %s167, %s170
      %p176 = scmp.eq.s32.totalorder %s21, 0
      %p177 = por %p175, %p176
      %p178 = scmp.ne.s32.totalorder %s167, %s170
      %p179 = scmp.eq.s32.totalorder %s26, 1
      %p180 = por %p178, %p179
      %p181 = scmp.ne.s32.totalorder %s170, %s171
      %p182 = scmp.eq.s32.totalorder %s26, 0
      %p183 = por %p181, %p182
      %p184 = scmp.ne.s32.totalorder %s170, %s171
      %p185 = scmp.eq.s32.totalorder %s27, 1
      %p186 = por %p184, %p185
      %p188 = scmp.ne.s32.totalorder %s171, %s187
      %p189 = scmp.eq.s32.totalorder %s27, 0
      %p190 = por %p188, %p189
      %s191 = ssub.s32 %s21, %s28
      %p192 = scmp.eq.s32.totalorder %s191, 0
      %s194 = sadd.s32 %s193, 1
      %s195 = scalar_select %p192, %s193, %s194
      %p198 = pneg %p192
      %p199 = scmp.eq.s32.totalorder %s21, 1
      %p200 = por %p198, %p199
      %p201 = scmp.ne.s32.totalorder %s193, %s196
      %p202 = scmp.eq.s32.totalorder %s21, 0
      %p203 = por %p201, %p202
      %p204 = scmp.ne.s32.totalorder %s193, %s196
      %p205 = scmp.eq.s32.totalorder %s26, 1
      %p206 = por %p204, %p205
      %p207 = scmp.ne.s32.totalorder %s196, %s197
      %p208 = scmp.eq.s32.totalorder %s26, 0
      %p209 = por %p207, %p208
      %p210 = scmp.ne.s32.totalorder %s196, %s197
      %p211 = scmp.eq.s32.totalorder %s27, 1
      %p212 = por %p210, %p211
      %p214 = scmp.ne.s32.totalorder %s197, %s213
      %p215 = scmp.eq.s32.totalorder %s27, 0
      %p216 = por %p214, %p215
      %s217 = ssub.s32 %s21, %s28
      %p218 = scmp.eq.s32.totalorder %s217, 0
      %s220 = sadd.s32 %s219, 1
      %s221 = scalar_select %p218, %s219, %s220
      %p224 = pneg %p218
      %p225 = scmp.eq.s32.totalorder %s21, 1
      %p226 = por %p224, %p225
      %p227 = scmp.ne.s32.totalorder %s219, %s222
      %p228 = scmp.eq.s32.totalorder %s21, 0
      %p229 = por %p227, %p228
      %p230 = scmp.ne.s32.totalorder %s219, %s222
      %p231 = scmp.eq.s32.totalorder %s26, 1
      %p232 = por %p230, %p231
      %p233 = scmp.ne.s32.totalorder %s222, %s223
      %p234 = scmp.eq.s32.totalorder %s26, 0
      %p235 = por %p233, %p234
      %p236 = scmp.ne.s32.totalorder %s222, %s223
      %p237 = scmp.eq.s32.totalorder %s27, 1
      %p238 = por %p236, %p237
      %p240 = scmp.ne.s32.totalorder %s223, %s239
      %p241 = scmp.eq.s32.totalorder %s27, 0
      %p242 = por %p240, %p241
      %s243 = ssub.s32 %s21, %s28
      %p244 = scmp.eq.s32.totalorder %s243, 0
      %s246 = sadd.s32 %s245, 1
      %s247 = scalar_select %p244, %s245, %s246
      %p250 = pneg %p244
      %p251 = scmp.eq.s32.totalorder %s21, 1
      %p252 = por %p250, %p251
      %p253 = scmp.ne.s32.totalorder %s245, %s248
      %p254 = scmp.eq.s32.totalorder %s21, 0
      %p255 = por %p253, %p254
      %p256 = scmp.ne.s32.totalorder %s245, %s248
      %p257 = scmp.eq.s32.totalorder %s26, 1
      %p258 = por %p256, %p257
      %p259 = scmp.ne.s32.totalorder %s248, %s249
      %p260 = scmp.eq.s32.totalorder %s26, 0
      %p261 = por %p259, %p260
      %p262 = scmp.ne.s32.totalorder %s248, %s249
      %p263 = scmp.eq.s32.totalorder %s27, 1
      %p264 = por %p262, %p263
      %p266 = scmp.ne.s32.totalorder %s249, %s265
      %p267 = scmp.eq.s32.totalorder %s27, 0
      %p268 = por %p266, %p267
      %s269 = ssub.s32 %s21, %s28
      %p270 = scmp.eq.s32.totalorder %s269, 0
      %s272 = sadd.s32 %s271, 1
      %s273 = scalar_select %p270, %s271, %s272
      %p276 = pneg %p270
      %p277 = scmp.eq.s32.totalorder %s21, 1
      %p278 = por %p276, %p277
      %p279 = scmp.ne.s32.totalorder %s271, %s274
      %p280 = scmp.eq.s32.totalorder %s21, 0
      %p281 = por %p279, %p280
      %p282 = scmp.ne.s32.totalorder %s271, %s274
      %p283 = scmp.eq.s32.totalorder %s26, 1
      %p284 = por %p282, %p283
      %p285 = scmp.ne.s32.totalorder %s274, %s275
      %p286 = scmp.eq.s32.totalorder %s26, 0
      %p287 = por %p285, %p286
      %p288 = scmp.ne.s32.totalorder %s274, %s275
      %p289 = scmp.eq.s32.totalorder %s27, 1
      %p290 = por %p288, %p289
      %p292 = scmp.ne.s32.totalorder %s275, %s291
      %p293 = scmp.eq.s32.totalorder %s27, 0
      %p294 = por %p292, %p293
      %s295 = ssub.s32 %s21, %s28
      %p296 = scmp.eq.s32.totalorder %s295, 0
      %s298 = sadd.s32 %s297, 1
      %s299 = scalar_select %p296, %s297, %s298
      %p302 = pneg %p296
      %p303 = scmp.eq.s32.totalorder %s21, 1
      %p304 = por %p302, %p303
      %p305 = scmp.ne.s32.totalorder %s297, %s300
      %p306 = scmp.eq.s32.totalorder %s21, 0
      %p307 = por %p305, %p306
      %p308 = scmp.ne.s32.totalorder %s297, %s300
      %p309 = scmp.eq.s32.totalorder %s26, 1
      %p310 = por %p308, %p309
      %p311 = scmp.ne.s32.totalorder %s300, %s301
      %p312 = scmp.eq.s32.totalorder %s26, 0
      %p313 = por %p311, %p312
      %p314 = scmp.ne.s32.totalorder %s300, %s301
      %p315 = scmp.eq.s32.totalorder %s27, 1
      %p316 = por %p314, %p315
      %p318 = scmp.ne.s32.totalorder %s301, %s317
      %p319 = scmp.eq.s32.totalorder %s27, 0
      %p320 = por %p318, %p319
      %s322 = sadd.s32 %s321, 1
      %p325 = scmp.eq.s32.totalorder %s21, 1
      %p326 = scmp.ne.s32.totalorder %s321, %s323
      %p327 = scmp.eq.s32.totalorder %s21, 0
      %p328 = por %p326, %p327
      %p329 = scmp.ne.s32.totalorder %s321, %s323
      %p330 = scmp.eq.s32.totalorder %s26, 1
      %p331 = por %p329, %p330
      %p332 = scmp.ne.s32.totalorder %s323, %s324
      %p333 = scmp.eq.s32.totalorder %s26, 0
      %p334 = por %p332, %p333
      %p335 = scmp.ne.s32.totalorder %s323, %s324
      %p336 = scmp.eq.s32.totalorder %s27, 1
      %p337 = por %p335, %p336
      %p339 = scmp.ne.s32.totalorder %s324, %s338
      %p340 = scmp.eq.s32.totalorder %s27, 0
      %p341 = por %p339, %p340
      %p342 = scmp.le.s32.totalorder 1, %s21
      %p343 = scmp.lt.s32.totalorder %s21, 3
      %p344 = pnand %p342, %p343
      %p345 = pneg %p344
      // Predicated region
      $region9: #{tpu_custom_call.1} parent=5 // pred_check
        _
      $region10: #{tpu_custom_call.1} parent=5 // pred_check_branch
        %347 = sbr.rel (%p344) target = $region12
      $region11: #{tpu_custom_call.1} parent=5 // pred_region
        %s348 = ssub.s32 %s21, 1
        // Predicated region
        $region13: #{tpu_custom_call.1} parent=11 // pred_check
          %p349 = pneg %p42
        $region14: #{tpu_custom_call.1} parent=11 // pred_check_branch
          %351 = sbr.rel (%p349) target = $region16
        $region15: #{tpu_custom_call.1} parent=11 // pred_region
          _
        $region16: #{tpu_custom_call.1} parent=11 // pred_fallthru
          _
        // Predicated region
        $region17: #{tpu_custom_call.1} parent=11 // pred_check
          %p352 = pneg %p63
        $region18: #{tpu_custom_call.1} parent=11 // pred_check_branch
          %354 = sbr.rel (%p352) target = $region20
        $region19: #{tpu_custom_call.1} parent=11 // pred_region
          _
        $region20: #{tpu_custom_call.1} parent=11 // pred_fallthru
          _
        // Predicated region
        $region21: #{tpu_custom_call.1} parent=11 // pred_check
          %p355 = pneg %p84
        $region22: #{tpu_custom_call.1} parent=11 // pred_check_branch
          %357 = sbr.rel (%p355) target = $region24
        $region23: #{tpu_custom_call.1} parent=11 // pred_region
          %s359 = ssub.s32 512, 512
          %360 = vsyncadd [#allocation5], %s359
          %s361 = sshll.u32 [#allocation4], 4
          %s362 = int_to_ptr.vmem [resolvable:$true] %s361
          %367 = dma.hbm_to_vmem [thread:$0]  %s2, 512, %s362, [#allocation5], 128, 128, 8
        $region24: #{tpu_custom_call.1} parent=11 // pred_fallthru
          _
        // Predicated region
        $region25: #{tpu_custom_call.1} parent=11 // pred_check
          %p368 = pneg %p105
        $region26: #{tpu_custom_call.1} parent=11 // pred_check_branch
          %370 = sbr.rel (%p368) target = $region28
        $region27: #{tpu_custom_call.1} parent=11 // pred_region
          %s372 = ssub.s32 512, 512
          %373 = vsyncadd [#allocation8], %s372
          %s374 = sshll.u32 [#allocation7], 4
          %s375 = int_to_ptr.vmem [resolvable:$true] %s374
          %380 = dma.hbm_to_vmem [thread:$0]  %s3, 512, %s375, [#allocation8], 64, 64, 4
        $region28: #{tpu_custom_call.1} parent=11 // pred_fallthru
          _
      $region12: #{tpu_custom_call.1} parent=5 // pred_fallthru
        _
      %p381 = scmp.lt.s32.totalorder %s21, 2
      // Predicated region
      $region29: #{tpu_custom_call.1} parent=5 // pred_check
        %p382 = pneg %p381
      $region30: #{tpu_custom_call.1} parent=5 // pred_check_branch
        %384 = sbr.rel (%p382) target = $region32
      $region31: #{tpu_custom_call.1} parent=5 // pred_region
        // Predicated region
        $region33: #{tpu_custom_call.1} parent=31 // pred_check
          %p385 = pneg %p125
        $region34: #{tpu_custom_call.1} parent=31 // pred_check_branch
          %387 = sbr.rel (%p385) target = $region36
        $region35: #{tpu_custom_call.1} parent=31 // pred_region
          %p388 = scmp.lt.s32.totalorder %s21, 1
          %s389 = scalar_select %p388, %s21, 1
          %s390 = smul.addr %s389, 16
          %s391 = smul.addr %s390, 4
          %s392 = scalar_lea.vmem %s4, %s391
        $region36: #{tpu_custom_call.1} parent=31 // pred_fallthru
          _
        // Predicated region
        $region37: #{tpu_custom_call.1} parent=31 // pred_check
          %p393 = pneg %p151
        $region38: #{tpu_custom_call.1} parent=31 // pred_check_branch
          %395 = sbr.rel (%p393) target = $region40
        $region39: #{tpu_custom_call.1} parent=31 // pred_region
          %p396 = scmp.lt.s32.totalorder %s21, 1
          %s397 = scalar_select %p396, %s21, 1
          %s398 = scalar_lea.vmem %s5, %s397
        $region40: #{tpu_custom_call.1} parent=31 // pred_fallthru
          _
        // Predicated region
        $region41: #{tpu_custom_call.1} parent=31 // pred_check
          %p399 = pneg %p177
        $region42: #{tpu_custom_call.1} parent=31 // pred_check_branch
          %401 = sbr.rel (%p399) target = $region44
        $region43: #{tpu_custom_call.1} parent=31 // pred_region
          %s402 = sand.u32 %s21, 1
          %s403 = scalar_lea.sflag [#allocation5], %s402
          %s404 = sand.u32 %s167, 1
          %s405 = smul.addr %s404, 64
          %s406 = scalar_lea.vmem [#allocation9], %s405
          %s408 = ssub.s32 1024, 1024
          %409 = vsyncadd %s403, %s408
          %s410 = smul.addr %s21, 16
          %s411 = smul.addr %s410, 64
          %s412 = scalar_lea.hbm %s6, %s411
          %s413 = sshll.u32 %s406, 4
          %s414 = int_to_ptr.vmem [resolvable:$true] %s413
          %419 = dma.hbm_to_vmem [thread:$0]  %s412, 1024, %s414, %s403, 64, 64, 4
        $region44: #{tpu_custom_call.1} parent=31 // pred_fallthru
          _
        // Predicated region
        $region45: #{tpu_custom_call.1} parent=31 // pred_check
          %p420 = pneg %p203
        $region46: #{tpu_custom_call.1} parent=31 // pred_check_branch
          %422 = sbr.rel (%p420) target = $region48
        $region47: #{tpu_custom_call.1} parent=31 // pred_region
          %p423 = scmp.lt.s32.totalorder %s21, 1
          %s424 = scalar_select %p423, %s21, 1
          %s425 = scalar_lea.vmem %s7, %s424
        $region48: #{tpu_custom_call.1} parent=31 // pred_fallthru
          _
        // Predicated region
        $region49: #{tpu_custom_call.1} parent=31 // pred_check
          %p426 = pneg %p229
        $region50: #{tpu_custom_call.1} parent=31 // pred_check_branch
          %428 = sbr.rel (%p426) target = $region52
        $region51: #{tpu_custom_call.1} parent=31 // pred_region
          %s429 = sand.u32 %s21, 1
          %s430 = scalar_lea.sflag [#allocation5], %s429
          %s431 = sand.u32 %s219, 1
          %s432 = smul.addr %s431, 64
          %s433 = scalar_lea.vmem [#allocation10], %s432
          %s435 = ssub.s32 1024, 1024
          %436 = vsyncadd %s430, %s435
          %s437 = smul.addr %s21, 16
          %s438 = smul.addr %s437, 64
          %s439 = scalar_lea.hbm %s8, %s438
          %s440 = sshll.u32 %s433, 4
          %s441 = int_to_ptr.vmem [resolvable:$true] %s440
          %446 = dma.hbm_to_vmem [thread:$0]  %s439, 1024, %s441, %s430, 64, 64, 4
        $region52: #{tpu_custom_call.1} parent=31 // pred_fallthru
          _
        // Predicated region
        $region53: #{tpu_custom_call.1} parent=31 // pred_check
          %p447 = pneg %p255
        $region54: #{tpu_custom_call.1} parent=31 // pred_check_branch
          %449 = sbr.rel (%p447) target = $region56
        $region55: #{tpu_custom_call.1} parent=31 // pred_region
          %p450 = scmp.lt.s32.totalorder %s21, 1
          %s451 = scalar_select %p450, %s21, 1
          %s452 = scalar_lea.vmem %s9, %s451
        $region56: #{tpu_custom_call.1} parent=31 // pred_fallthru
          _
        // Predicated region
        $region57: #{tpu_custom_call.1} parent=31 // pred_check
          %p453 = pneg %p281
        $region58: #{tpu_custom_call.1} parent=31 // pred_check_branch
          %455 = sbr.rel (%p453) target = $region60
        $region59: #{tpu_custom_call.1} parent=31 // pred_region
          %p456 = scmp.lt.s32.totalorder %s21, 1
          %s457 = scalar_select %p456, %s21, 1
          %s458 = scalar_lea.vmem %s10, %s457
        $region60: #{tpu_custom_call.1} parent=31 // pred_fallthru
          _
        // Predicated region
        $region61: #{tpu_custom_call.1} parent=31 // pred_check
          %p459 = pneg %p307
        $region62: #{tpu_custom_call.1} parent=31 // pred_check_branch
          %461 = sbr.rel (%p459) target = $region64
        $region63: #{tpu_custom_call.1} parent=31 // pred_region
          %p462 = scmp.lt.s32.totalorder %s21, 1
          %s463 = scalar_select %p462, %s21, 1
          %s464 = scalar_lea.vmem %s11, %s463
        $region64: #{tpu_custom_call.1} parent=31 // pred_fallthru
          _
      $region32: #{tpu_custom_call.1} parent=5 // pred_fallthru
        _
      %p465 = scmp.le.s32.totalorder 1, %s21
      %p466 = scmp.lt.s32.totalorder %s21, 3
      %p467 = pnand %p465, %p466
      %p468 = pneg %p467
      // Predicated region
      $region65: #{tpu_custom_call.1} parent=5 // pred_check
        _
      $region66: #{tpu_custom_call.1} parent=5 // pred_check_branch
        %470 = sbr.rel (%p467) target = $region68
      $region67: #{tpu_custom_call.1} parent=5 // pred_region
        %s471 = ssub.s32 %s21, 1
        // Predicated region
        $region69: #{tpu_custom_call.1} parent=67 // pred_check
          %p472 = pneg %p84
        $region70: #{tpu_custom_call.1} parent=67 // pred_check_branch
          %474 = sbr.rel (%p472) target = $region72
        $region71: #{tpu_custom_call.1} parent=67 // pred_region
          %475 = dma.done [#allocation5], 512
        $region72: #{tpu_custom_call.1} parent=67 // pred_fallthru
          _
        // Predicated region
        $region73: #{tpu_custom_call.1} parent=67 // pred_check
          %p476 = pneg %p105
        $region74: #{tpu_custom_call.1} parent=67 // pred_check_branch
          %478 = sbr.rel (%p476) target = $region76
        $region75: #{tpu_custom_call.1} parent=67 // pred_region
          %479 = dma.done [#allocation8], 512
        $region76: #{tpu_custom_call.1} parent=67 // pred_fallthru
          _
        %s480 = sand.u32 %s26, 1
        %s481 = scalar_lea.sflag [#allocation5], %s480
        %s482 = sand.u32 %s170, 1
        %s483 = smul.addr %s482, 64
        %s484 = scalar_lea.vmem [#allocation9], %s483
        // Predicated region
        $region77: #{tpu_custom_call.1} parent=67 // pred_check
          %p485 = pneg %p183
        $region78: #{tpu_custom_call.1} parent=67 // pred_check_branch
          %487 = sbr.rel (%p485) target = $region80
        $region79: #{tpu_custom_call.1} parent=67 // pred_region
          %488 = dma.done %s481, 1024
        $region80: #{tpu_custom_call.1} parent=67 // pred_fallthru
          _
        %s489 = sand.u32 %s26, 1
        %s490 = scalar_lea.sflag [#allocation5], %s489
        %s491 = sand.u32 %s222, 1
        %s492 = smul.addr %s491, 64
        %s493 = scalar_lea.vmem [#allocation10], %s492
        // Predicated region
        $region81: #{tpu_custom_call.1} parent=67 // pred_check
          %p494 = pneg %p235
        $region82: #{tpu_custom_call.1} parent=67 // pred_check_branch
          %496 = sbr.rel (%p494) target = $region84
        $region83: #{tpu_custom_call.1} parent=67 // pred_region
          %497 = dma.done %s490, 1024
        $region84: #{tpu_custom_call.1} parent=67 // pred_fallthru
          _
        %p498 = pneg %p42
        %p499 = pneg %p39
        %p500 = pneg %p63
        %p501 = pneg %p60
        %p502 = pneg %p84
        %p503 = pneg %p81
        %p504 = pneg %p105
        %p505 = pneg %p102
        %p506 = scmp.lt.s32.totalorder %s26, 1
        %s507 = scalar_select %p506, %s26, 1
        %s508 = smul.addr %s507, 16
        %s509 = smul.addr %s508, 4
        %s510 = scalar_lea.vmem %s4, %s509
        %p511 = pneg %p131
        %p512 = pneg %p128
        %p513 = scmp.lt.s32.totalorder %s26, 1
        %s514 = scalar_select %p513, %s26, 1
        %s515 = scalar_lea.vmem %s5, %s514
        %p516 = pneg %p157
        %p517 = pneg %p154
        %s518 = sand.u32 %s26, 1
        %s519 = scalar_lea.sflag [#allocation5], %s518
        %s520 = sand.u32 %s170, 1
        %s521 = smul.addr %s520, 64
        %s522 = scalar_lea.vmem [#allocation9], %s521
        %p523 = pneg %p183
        %p524 = pneg %p180
        %p525 = scmp.lt.s32.totalorder %s26, 1
        %s526 = scalar_select %p525, %s26, 1
        %s527 = scalar_lea.vmem %s7, %s526
        %p528 = pneg %p209
        %p529 = pneg %p206
        %s530 = sand.u32 %s26, 1
        %s531 = scalar_lea.sflag [#allocation5], %s530
        %s532 = sand.u32 %s222, 1
        %s533 = smul.addr %s532, 64
        %s534 = scalar_lea.vmem [#allocation10], %s533
        %p535 = pneg %p235
        %p536 = pneg %p232
        %p537 = scmp.lt.s32.totalorder %s26, 1
        %s538 = scalar_select %p537, %s26, 1
        %s539 = scalar_lea.vmem %s9, %s538
        %p540 = pneg %p261
        %p541 = pneg %p258
        %p542 = scmp.lt.s32.totalorder %s26, 1
        %s543 = scalar_select %p542, %s26, 1
        %s544 = scalar_lea.vmem %s10, %s543
        %p545 = pneg %p287
        %p546 = pneg %p284
        %p547 = scmp.lt.s32.totalorder %s26, 1
        %s548 = scalar_select %p547, %s26, 1
        %s549 = scalar_lea.vmem %s11, %s548
        %p550 = pneg %p313
        %p551 = pneg %p310
        %p552 = pneg %p334
        %p553 = pneg %p331
        %p554 = scmp.lt.s32.totalorder %s26, 1
        %s555 = scalar_select %p554, %s26, 1
        %s556 = smul.addr %s555, 16
        %s557 = smul.addr %s556, 4
        %s558 = scalar_lea.vmem %s4, %s557
        %p559 = scmp.lt.s32.totalorder %s26, 1
        %s560 = scalar_select %p559, %s26, 1
        %s561 = scalar_lea.vmem %s5, %s560
        %p562 = scmp.lt.s32.totalorder %s26, 1
        %s563 = scalar_select %p562, %s26, 1
        %s564 = scalar_lea.vmem %s7, %s563
        %p565 = scmp.lt.s32.totalorder %s26, 1
        %s566 = scalar_select %p565, %s26, 1
        %s567 = scalar_lea.vmem %s9, %s566
        %p568 = scmp.lt.s32.totalorder %s26, 1
        %s569 = scalar_select %p568, %s26, 1
        %s570 = scalar_lea.vmem %s10, %s569
        %p571 = scmp.lt.s32.totalorder %s26, 1
        %s572 = scalar_select %p571, %s26, 1
        %s573 = scalar_lea.vmem %s11, %s572
        %p575 = scmp.eq.s32.totalorder %s26, 0
        // Predicated region
        $region85: #{tpu_custom_call.1} parent=67 // pred_check
          %p576 = pneg %p575
        $region86: #{tpu_custom_call.1} parent=67 // pred_check_branch
          %578 = sbr.rel (%p576) target = $region88
        $region87: #{tpu_custom_call.1} parent=67 // pred_region
          %v579 = vld [vmem:[#allocation4] sm:$0xff]
          %v580 = vld [vmem:[#allocation4 + $0x8] sm:$0xff]
          %v581 = vld [vmem:[#allocation4 + $0x10] sm:$0xff]
          %v582 = vld [vmem:[#allocation4 + $0x18] sm:$0xff]
          %583 = vst [vmem:[#allocation11] sm:$0xff] %v579
          %584 = vst [vmem:[#allocation11 + $0x8] sm:$0xff] %v580
          %585 = vst [vmem:[#allocation11 + $0x10] sm:$0xff] %v581
          %586 = vst [vmem:[#allocation11 + $0x18] sm:$0xff] %v582
          %v587 = vlaneseq
          %v588 = vand.u32 %v587, 127
          %v589 = vld [vmem:[%s0] sm:$0xff]
          %v590 = vld [vmem:[%s0 + $0x8] sm:$0xff]
          %v591 = vld [vmem:[%s0 + $0x10] sm:$0xff]
          %v592 = vld [vmem:[%s0 + $0x18] sm:$0xff]
          %v593 = vld [vmem:[%s0 + $0x20] sm:$0xff]
          %v594 = vld [vmem:[%s0 + $0x28] sm:$0xff]
          %v595 = vld [vmem:[%s0 + $0x30] sm:$0xff]
          %v596 = vld [vmem:[%s0 + $0x38] sm:$0xff]
          %597 = vset.pattern.permute.xlu0 0
          %598 = vperm.xlu0 %597, %v589
          %v599 = vpop.permute.xlu0 %598
          %600 = vset.pattern.permute.xlu0 0
          %601 = vperm.xlu0 %600, %v590
          %v602 = vpop.permute.xlu0 %601
          %603 = vset.pattern.permute.xlu0 0
          %604 = vperm.xlu0 %603, %v591
          %v605 = vpop.permute.xlu0 %604
          %606 = vset.pattern.permute.xlu0 0
          %607 = vperm.xlu0 %606, %v592
          %v608 = vpop.permute.xlu0 %607
          %609 = vset.pattern.permute.xlu0 0
          %610 = vperm.xlu0 %609, %v593
          %v611 = vpop.permute.xlu0 %610
          %612 = vset.pattern.permute.xlu0 0
          %613 = vperm.xlu0 %612, %v594
          %v614 = vpop.permute.xlu0 %613
          %615 = vset.pattern.permute.xlu0 0
          %616 = vperm.xlu0 %615, %v595
          %v617 = vpop.permute.xlu0 %616
          %618 = vset.pattern.permute.xlu0 0
          %619 = vperm.xlu0 %618, %v596
          %v620 = vpop.permute.xlu0 %619
          %vm621 = vcmp.eq.s32.totalorder %v588, %v599
          %vm622 = vcmp.eq.s32.totalorder %v588, %v602
          %vm623 = vcmp.eq.s32.totalorder %v588, %v605
          %vm624 = vcmp.eq.s32.totalorder %v588, %v608
          %vm625 = vcmp.eq.s32.totalorder %v588, %v611
          %vm626 = vcmp.eq.s32.totalorder %v588, %v614
          %vm627 = vcmp.eq.s32.totalorder %v588, %v617
          %vm628 = vcmp.eq.s32.totalorder %v588, %v620
          %v629 = vsel %vm621, 1, 0
          %v630 = vsel %vm622, 1, 0
          %v631 = vsel %vm623, 1, 0
          %v632 = vsel %vm624, 1, 0
          %v633 = vsel %vm625, 1, 0
          %v634 = vsel %vm626, 1, 0
          %v635 = vsel %vm627, 1, 0
          %v636 = vsel %vm628, 1, 0
          %v637 = vcvt.s32.f32 %v629
          %v638 = vcvt.s32.f32 %v630
          %v639 = vcvt.s32.f32 %v631
          %v640 = vcvt.s32.f32 %v632
          %v641 = vcvt.s32.f32 %v633
          %v642 = vcvt.s32.f32 %v634
          %v643 = vcvt.s32.f32 %v635
          %v644 = vcvt.s32.f32 %v636
          %v645 = vpack.c.bf16 %v638, %v637
          %v646 = vpack.c.bf16 %v640, %v639
          %v647 = vpack.c.bf16 %v642, %v641
          %v648 = vpack.c.bf16 %v644, %v643
          %v653 = vunpack.c.l.b16 %v645
          %v654 = vunpack.c.h.b16 %v645
          %v655 = vunpack.c.l.b16 %v646
          %v656 = vunpack.c.h.b16 %v646
          %v657 = vunpack.c.l.b16 %v647
          %v658 = vunpack.c.h.b16 %v647
          %v659 = vunpack.c.l.b16 %v648
          %v660 = vunpack.c.h.b16 %v648
          %v661 = vpack.c.b16 %v653, %v653
          %v662 = vpack.c.b16 %v654, %v654
          %v663 = vpack.c.b16 %v655, %v655
          %v664 = vpack.c.b16 %v656, %v656
          %v665 = vpack.c.b16 %v657, %v657
          %v666 = vpack.c.b16 %v658, %v658
          %v667 = vpack.c.b16 %v659, %v659
          %v668 = vpack.c.b16 %v660, %v660
          %vm677 = vcmask 257024
          %678 = vst.msk [vmem:[#allocation2] sm:$0xf] %vm677, %v661
          %679 = vst.msk [vmem:[#allocation2 + $0x4] sm:$0xf] %vm677, %v662
          %680 = vst.msk [vmem:[#allocation2 + $0x8] sm:$0xf] %vm677, %v663
          %681 = vst.msk [vmem:[#allocation2 + $0xc] sm:$0xf] %vm677, %v664
          %682 = vst.msk [vmem:[#allocation2 + $0x10] sm:$0xf] %vm677, %v665
          %683 = vst.msk [vmem:[#allocation2 + $0x14] sm:$0xf] %vm677, %v666
          %684 = vst.msk [vmem:[#allocation2 + $0x18] sm:$0xf] %vm677, %v667
          %685 = vst.msk [vmem:[#allocation2 + $0x1c] sm:$0xf] %vm677, %v668
          %v686 = vlaneseq
          %v687 = vshrl.u32 %v686, 7
          %v688 = vadd.s32 %v687, 8
          %v689 = vadd.s32 %v687, 16
          %v690 = vadd.s32 %v687, 24
          %v691 = vld [vmem:[%s1] sm:$0x1]
          %v692 = vlaneseq
          %v693 = vshrl.u32 %v692, 7
          %v694 = vsub.s32 0, %v693
          %v695 = vrot.slane %v691, %v694
          %vm696 = vcmp.eq.s32.totalorder %v687, %v695
          %vm697 = vcmp.eq.s32.totalorder %v688, %v695
          %vm698 = vcmp.eq.s32.totalorder %v689, %v695
          %vm699 = vcmp.eq.s32.totalorder %v690, %v695
          %v700 = vsel %vm696, 1, 0
          %v701 = vsel %vm697, 1, 0
          %v702 = vsel %vm698, 1, 0
          %v703 = vsel %vm699, 1, 0
          %v704 = vcvt.s32.f32 %v700
          %v705 = vcvt.s32.f32 %v701
          %v706 = vcvt.s32.f32 %v702
          %v707 = vcvt.s32.f32 %v703
          %v708 = vpack.c.bf16 %v705, %v704
          %v709 = vpack.c.bf16 %v707, %v706
          %v712 = vunpack.c.l.b16 %v708
          %v713 = vunpack.c.h.b16 %v708
          %v714 = vunpack.c.l.b16 %v709
          %v715 = vunpack.c.h.b16 %v709
          %v716 = vpack.c.b16 %v712, %v712
          %v717 = vpack.c.b16 %v713, %v713
          %v718 = vpack.c.b16 %v714, %v714
          %v719 = vpack.c.b16 %v715, %v715
          %vm724 = vcmask 519168
          %725 = vst.msk [vmem:[#allocation3] sm:$0xf] %vm724, %v716
          %726 = vst.msk [vmem:[#allocation3 + $0x4] sm:$0xf] %vm724, %v717
          %727 = vst.msk [vmem:[#allocation3 + $0x8] sm:$0xf] %vm724, %v718
          %728 = vst.msk [vmem:[#allocation3 + $0xc] sm:$0xf] %vm724, %v719
        $region88: #{tpu_custom_call.1} parent=67 // pred_fallthru
          _
        %v729 = vld [vmem:[#allocation11] sm:$0xff]
        %v730 = vld [vmem:[#allocation11 + $0x8] sm:$0xff]
        %v731 = vld [vmem:[#allocation11 + $0x10] sm:$0xff]
        %v732 = vld [vmem:[#allocation11 + $0x18] sm:$0xff]
        %v733 = vld [vmem:[#allocation7] sm:$0xf]
        %v734 = vld [vmem:[#allocation7 + $0x4] sm:$0xf]
        %v735 = vld [vmem:[#allocation7 + $0x8] sm:$0xf]
        %v736 = vld [vmem:[#allocation7 + $0xc] sm:$0xf]
        %v737 = vld [vmem:[#allocation7 + $0x10] sm:$0xf]
        %v738 = vld [vmem:[#allocation7 + $0x14] sm:$0xf]
        %v739 = vld [vmem:[#allocation7 + $0x18] sm:$0xf]
        %v740 = vld [vmem:[#allocation7 + $0x1c] sm:$0xf]
        %v741 = vld [vmem:[%s558] sm:$0xf]
        %v742 = vld [vmem:[%s558 + $0x4] sm:$0xf]
        %v743 = vld [vmem:[%s558 + $0x8] sm:$0xf]
        %v744 = vld [vmem:[%s558 + $0xc] sm:$0xf]
        %v745 = vld [vmem:[%s558 + $0x10] sm:$0xf]
        %v746 = vld [vmem:[%s558 + $0x14] sm:$0xf]
        %v747 = vld [vmem:[%s558 + $0x18] sm:$0xf]
        %v748 = vld [vmem:[%s558 + $0x1c] sm:$0xf]
        %v749 = vld [vmem:[%s558 + $0x20] sm:$0xf]
        %v750 = vld [vmem:[%s558 + $0x24] sm:$0xf]
        %v751 = vld [vmem:[%s558 + $0x28] sm:$0xf]
        %v752 = vld [vmem:[%s558 + $0x2c] sm:$0xf]
        %v753 = vld [vmem:[%s558 + $0x30] sm:$0xf]
        %v754 = vld [vmem:[%s558 + $0x34] sm:$0xf]
        %v755 = vld [vmem:[%s558 + $0x38] sm:$0xf]
        %v756 = vld [vmem:[%s558 + $0x3c] sm:$0xf]
        %v757 = vld [vmem:[%s561] sm:$0x1]
        %v759 = vlaneseq
        %v760 = vshrl.u32 %v759, 7
        %v761 = vsub.s32 0, %v760
        %v762 = vrot.slane %v757, %v761
        %v772 = vunpack.c.l.b16 %v733
        %v773 = vunpack.c.l.b16 %v734
        %v774 = vunpack.c.l.b16 %v735
        %v775 = vunpack.c.l.b16 %v736
        %v776 = vunpack.c.l.b16 %v737
        %v777 = vunpack.c.l.b16 %v738
        %v778 = vunpack.c.l.b16 %v739
        %v779 = vunpack.c.l.b16 %v740
        %v780 = vpack.c.b16 %v773, %v772
        %v781 = vpack.c.b16 %v775, %v774
        %v782 = vpack.c.b16 %v777, %v776
        %v783 = vpack.c.b16 %v779, %v778
        %v804 = vunpack.c.l.b16 %v741
        %v805 = vunpack.c.l.b16 %v742
        %v806 = vunpack.c.l.b16 %v743
        %v807 = vunpack.c.l.b16 %v744
        %v808 = vunpack.c.l.b16 %v745
        %v809 = vunpack.c.l.b16 %v746
        %v810 = vunpack.c.l.b16 %v747
        %v811 = vunpack.c.l.b16 %v748
        %v812 = vunpack.c.l.b16 %v749
        %v813 = vunpack.c.l.b16 %v750
        %v814 = vunpack.c.l.b16 %v751
        %v815 = vunpack.c.l.b16 %v752
        %v816 = vunpack.c.l.b16 %v753
        %v817 = vunpack.c.l.b16 %v754
        %v818 = vunpack.c.l.b16 %v755
        %v819 = vunpack.c.l.b16 %v756
        %v820 = vpack.c.b16 %v805, %v804
        %v821 = vpack.c.b16 %v807, %v806
        %v822 = vpack.c.b16 %v809, %v808
        %v823 = vpack.c.b16 %v811, %v810
        %v824 = vpack.c.b16 %v813, %v812
        %v825 = vpack.c.b16 %v815, %v814
        %v826 = vpack.c.b16 %v817, %v816
        %v827 = vpack.c.b16 %v819, %v818
        %836 = vmatprep.subr.bf16.mxu0 0
        %837 = vmatpush1.bf16.msra.mxu0 %v827
        %838 = vmatprep.subr.bf16.mxu0 0
        %839 = vmatpush1.bf16.msra.mxu0 %v826
        %840 = vmatprep.subr.bf16.mxu0 0
        %841 = vmatpush1.bf16.msra.mxu0 %v825
        %842 = vmatprep.subr.bf16.mxu0 0
        %843 = vmatpush1.bf16.msra.mxu0 %v824
        %844 = vmatprep.subr.bf16.mxu0 0
        %845 = vmatpush1.bf16.msra.mxu0 %v823
        %846 = vmatprep.subr.bf16.mxu0 0
        %847 = vmatpush1.bf16.msra.mxu0 %v822
        %848 = vmatprep.subr.bf16.mxu0 0
        %849 = vmatpush1.bf16.msra.mxu0 %v821
        %850 = vmatprep.subr.bf16.mxu0 0
        %851 = vmatpush1.bf16.msra.mxu0 %v820
        %852 = vmatprep.subr.bf16.mxu0 0
        %853 = vmatpush2.bf16.msra.mxu0 0
        %854 = vmatprep.subr.bf16.mxu0 0
        %855 = vmatpush2.bf16.msra.mxu0 0
        %856 = vmatprep.subr.bf16.mxu0 0
        %857 = vmatpush2.bf16.msra.mxu0 0
        %858 = vmatprep.subr.bf16.mxu0 0
        %859 = vmatpush2.bf16.msra.mxu0 0
        %860 = vmatprep.subr.bf16.mxu0 0
        %861 = vmatpush2.bf16.msra.mxu0 0
        %862 = vmatprep.subr.bf16.mxu0 0
        %863 = vmatpush2.bf16.msra.mxu0 0
        %864 = vmatprep.subr.bf16.mxu0 0
        %865 = vmatpush2.bf16.msra.mxu0 0
        %866 = vmatprep.subr.bf16.mxu0 0
        %867 = vmatpush2.bf16.msra.mxu0 0
        %868 = vmatprep.mubr.bf16.mxu0 0
        %869 = vmatmul.mubr.bf16.gmra.mxu0 %v780
        %v870 = vpop.f32.mrf.mxu0
        %v871 = vadd.f32 %v762, %v870
        %v872 = vpop.f32.mrf.mxu0
        %v873 = vpop.f32.mrf.mxu0
        %v874 = vadd.f32 %v762, %v873
        %v875 = vpop.f32.mrf.mxu0
        %876 = vmatprep.mubr.bf16.mxu0 0
        %877 = vmatmul.mubr.bf16.gmra.mxu0 %v781
        %v878 = vpop.f32.mrf.mxu0
        %v879 = vadd.f32 %v762, %v878
        %v880 = vpop.f32.mrf.mxu0
        %v881 = vpop.f32.mrf.mxu0
        %v882 = vadd.f32 %v762, %v881
        %v883 = vpop.f32.mrf.mxu0
        %884 = vmatprep.mubr.bf16.mxu0 0
        %885 = vmatmul.mubr.bf16.gmra.mxu0 %v782
        %v886 = vpop.f32.mrf.mxu0
        %v887 = vadd.f32 %v762, %v886
        %v888 = vpop.f32.mrf.mxu0
        %v889 = vpop.f32.mrf.mxu0
        %v890 = vadd.f32 %v762, %v889
        %v891 = vpop.f32.mrf.mxu0
        %892 = vmatprep.mubr.bf16.mxu0 0
        %893 = vmatmul.mubr.bf16.gmra.mxu0 %v783
        %v894 = vpop.f32.mrf.mxu0
        %v895 = vadd.f32 %v762, %v894
        %v896 = vpop.f32.mrf.mxu0
        %v897 = vpop.f32.mrf.mxu0
        %v898 = vadd.f32 %v762, %v897
        %v899 = vpop.f32.mrf.mxu0
        %900 = vdwg.mxu0
        %v901 = vld [vmem:[#allocation2] sm:$0xf]
        %v902 = vld [vmem:[#allocation2 + $0x4] sm:$0xf]
        %v903 = vld [vmem:[#allocation2 + $0x8] sm:$0xf]
        %v904 = vld [vmem:[#allocation2 + $0xc] sm:$0xf]
        %v905 = vld [vmem:[#allocation2 + $0x10] sm:$0xf]
        %v906 = vld [vmem:[#allocation2 + $0x14] sm:$0xf]
        %v907 = vld [vmem:[#allocation2 + $0x18] sm:$0xf]
        %v908 = vld [vmem:[#allocation2 + $0x1c] sm:$0xf]
        %v909 = vpack.c.bf16 %v730, %v729
        %v910 = vpack.c.bf16 %v732, %v731
        %v919 = vunpack.c.l.b16 %v901
        %v920 = vunpack.c.l.b16 %v902
        %v921 = vunpack.c.l.b16 %v903
        %v922 = vunpack.c.l.b16 %v904
        %v923 = vunpack.c.l.b16 %v905
        %v924 = vunpack.c.l.b16 %v906
        %v925 = vunpack.c.l.b16 %v907
        %v926 = vunpack.c.l.b16 %v908
        %v927 = vpack.c.b16 %v920, %v919
        %v928 = vpack.c.b16 %v922, %v921
        %v929 = vpack.c.b16 %v924, %v923
        %v930 = vpack.c.b16 %v926, %v925
        %vm931 = vcmask 261120
        %v933 = vsel %vm931, %v927, 0
        %v936 = vsel %vm931, %v928, 0
        %v939 = vsel %vm931, %v929, 0
        %v942 = vsel %vm931, %v930, 0
        %944 = vmatprep.subr.bf16.mxu0 0
        %945 = vmatpush1.bf16.msra.mxu0 0
        %946 = vmatprep.subr.bf16.mxu0 0
        %947 = vmatpush1.bf16.msra.mxu0 0
        %948 = vmatprep.subr.bf16.mxu0 0
        %949 = vmatpush1.bf16.msra.mxu0 0
        %950 = vmatprep.subr.bf16.mxu0 0
        %951 = vmatpush1.bf16.msra.mxu0 0
        %952 = vmatprep.subr.bf16.mxu0 0
        %953 = vmatpush1.bf16.msra.mxu0 0
        %954 = vmatprep.subr.bf16.mxu0 0
        %955 = vmatpush1.bf16.msra.mxu0 0
        %956 = vmatprep.subr.bf16.mxu0 0
        %957 = vmatpush1.bf16.msra.mxu0 %v910
        %958 = vmatprep.subr.bf16.mxu0 0
        %959 = vmatpush1.bf16.msra.mxu0 %v909
        %960 = vmatprep.subr.bf16.mxu0 0
        %961 = vmatpush2.bf16.msra.mxu0 0
        %962 = vmatprep.subr.bf16.mxu0 0
        %963 = vmatpush2.bf16.msra.mxu0 0
        %964 = vmatprep.subr.bf16.mxu0 0
        %965 = vmatpush2.bf16.msra.mxu0 0
        %966 = vmatprep.subr.bf16.mxu0 0
        %967 = vmatpush2.bf16.msra.mxu0 0
        %968 = vmatprep.subr.bf16.mxu0 0
        %969 = vmatpush2.bf16.msra.mxu0 0
        %970 = vmatprep.subr.bf16.mxu0 0
        %971 = vmatpush2.bf16.msra.mxu0 0
        %972 = vmatprep.subr.bf16.mxu0 0
        %973 = vmatpush2.bf16.msra.mxu0 0
        %974 = vmatprep.subr.bf16.mxu0 0
        %975 = vmatpush2.bf16.msra.mxu0 0
        %976 = vmatprep.mubr.bf16.mxu0 0
        %977 = vmatmul.mubr.bf16.gmra.mxu0 %v933
        %v978 = vpop.f32.mrf.mxu0
        %v979 = vadd.f32 %v871, %v978
        %v980 = vpop.f32.mrf.mxu0
        %v981 = vpop.f32.mrf.mxu0
        %v982 = vadd.f32 %v874, %v981
        %v983 = vpop.f32.mrf.mxu0
        %984 = vmatprep.mubr.bf16.mxu0 0
        %985 = vmatmul.mubr.bf16.gmra.mxu0 %v936
        %v986 = vpop.f32.mrf.mxu0
        %v987 = vadd.f32 %v879, %v986
        %v988 = vpop.f32.mrf.mxu0
        %v989 = vpop.f32.mrf.mxu0
        %v990 = vadd.f32 %v882, %v989
        %v991 = vpop.f32.mrf.mxu0
        %992 = vmatprep.mubr.bf16.mxu0 0
        %993 = vmatmul.mubr.bf16.gmra.mxu0 %v939
        %v994 = vpop.f32.mrf.mxu0
        %v995 = vadd.f32 %v887, %v994
        %v996 = vpop.f32.mrf.mxu0
        %v997 = vpop.f32.mrf.mxu0
        %v998 = vadd.f32 %v890, %v997
        %v999 = vpop.f32.mrf.mxu0
        %1000 = vmatprep.mubr.bf16.mxu0 0
        %1001 = vmatmul.mubr.bf16.gmra.mxu0 %v942
        %v1002 = vpop.f32.mrf.mxu0
        %v1003 = vadd.f32 %v895, %v1002
        %v1004 = vpop.f32.mrf.mxu0
        %v1005 = vpop.f32.mrf.mxu0
        %v1006 = vadd.f32 %v898, %v1005
        %v1007 = vpop.f32.mrf.mxu0
        %1008 = vdwg.mxu0
        %v1009 = vmax.f32 %v979, 0.0
        %v1010 = vmax.f32 %v982, 0.0
        %v1011 = vmax.f32 %v987, 0.0
        %v1012 = vmax.f32 %v990, 0.0
        %v1013 = vmax.f32 %v995, 0.0
        %v1014 = vmax.f32 %v998, 0.0
        %v1015 = vmax.f32 %v1003, 0.0
        %v1016 = vmax.f32 %v1006, 0.0
        %v1017 = vld [vmem:[#allocation3] sm:$0xf]
        %v1018 = vld [vmem:[#allocation3 + $0x4] sm:$0xf]
        %v1019 = vld [vmem:[#allocation3 + $0x8] sm:$0xf]
        %v1020 = vld [vmem:[#allocation3 + $0xc] sm:$0xf]
        %v1021 = vpack.c.bf16 %v1010, %v1009
        %v1022 = vpack.c.bf16 %v1012, %v1011
        %v1023 = vpack.c.bf16 %v1014, %v1013
        %v1024 = vpack.c.bf16 %v1016, %v1015
        %v1029 = vunpack.c.l.b16 %v1017
        %v1030 = vunpack.c.l.b16 %v1018
        %v1031 = vunpack.c.l.b16 %v1019
        %v1032 = vunpack.c.l.b16 %v1020
        %v1033 = vpack.c.b16 %v1030, %v1029
        %v1034 = vpack.c.b16 %v1032, %v1031
        %vm1035 = vcmask 523264
        %v1037 = vsel %vm1035, %v1033, 0
        %v1040 = vsel %vm1035, %v1034, 0
        %1042 = vmatprep.subr.bf16.mxu0 0
        %1043 = vmatpush1.bf16.msra.mxu0 0
        %1044 = vmatprep.subr.bf16.mxu0 0
        %1045 = vmatpush1.bf16.msra.mxu0 0
        %1046 = vmatprep.subr.bf16.mxu0 0
        %1047 = vmatpush1.bf16.msra.mxu0 0
        %1048 = vmatprep.subr.bf16.mxu0 0
        %1049 = vmatpush1.bf16.msra.mxu0 0
        %1050 = vmatprep.subr.bf16.mxu0 0
        %1051 = vmatpush1.bf16.msra.mxu0 %v1024
        %1052 = vmatprep.subr.bf16.mxu0 0
        %1053 = vmatpush1.bf16.msra.mxu0 %v1023
        %1054 = vmatprep.subr.bf16.mxu0 0
        %1055 = vmatpush1.bf16.msra.mxu0 %v1022
        %1056 = vmatprep.subr.bf16.mxu0 0
        %1057 = vmatpush1.bf16.msra.mxu0 %v1021
        %1058 = vmatprep.subr.bf16.mxu0 0
        %1059 = vmatpush2.bf16.msra.mxu0 0
        %1060 = vmatprep.subr.bf16.mxu0 0
        %1061 = vmatpush2.bf16.msra.mxu0 0
        %1062 = vmatprep.subr.bf16.mxu0 0
        %1063 = vmatpush2.bf16.msra.mxu0 0
        %1064 = vmatprep.subr.bf16.mxu0 0
        %1065 = vmatpush2.bf16.msra.mxu0 0
        %1066 = vmatprep.subr.bf16.mxu0 0
        %1067 = vmatpush2.bf16.msra.mxu0 0
        %1068 = vmatprep.subr.bf16.mxu0 0
        %1069 = vmatpush2.bf16.msra.mxu0 0
        %1070 = vmatprep.subr.bf16.mxu0 0
        %1071 = vmatpush2.bf16.msra.mxu0 0
        %1072 = vmatprep.subr.bf16.mxu0 0
        %1073 = vmatpush2.bf16.msra.mxu0 0
        %1074 = vmatprep.mubr.bf16.mxu0 0
        %1075 = vmatmul.mubr.bf16.gmra.mxu0 %v1037
        %v1076 = vpop.f32.mrf.mxu0
        %v1077 = vadd.f32 0.0, %v1076
        %v1078 = vpop.f32.mrf.mxu0
        %v1079 = vpop.f32.mrf.mxu0
        %v1080 = vadd.f32 0.0, %v1079
        %v1081 = vpop.f32.mrf.mxu0
        %1082 = vmatprep.mubr.bf16.mxu0 0
        %1083 = vmatmul.mubr.bf16.gmra.mxu0 %v1040
        %v1084 = vpop.f32.mrf.mxu0
        %v1085 = vadd.f32 0.0, %v1084
        %v1086 = vpop.f32.mrf.mxu0
        %v1087 = vpop.f32.mrf.mxu0
        %v1088 = vadd.f32 0.0, %v1087
        %v1089 = vpop.f32.mrf.mxu0
        %1090 = vdwg.mxu0
        %v1091 = vadd.f32 %v729, %v1077
        %v1092 = vadd.f32 %v730, %v1080
        %v1093 = vadd.f32 %v731, %v1085
        %v1094 = vadd.f32 %v732, %v1088
        %v1095 = vpack.c.bf16 %v1092, %v1091
        %v1096 = vpack.c.bf16 %v1094, %v1093
        %v1097 = vld [vmem:[%s484] sm:$0xf]
        %v1098 = vld [vmem:[%s484 + $0x4] sm:$0xf]
        %v1099 = vld [vmem:[%s484 + $0x8] sm:$0xf]
        %v1100 = vld [vmem:[%s484 + $0xc] sm:$0xf]
        %v1101 = vld [vmem:[%s484 + $0x10] sm:$0xf]
        %v1102 = vld [vmem:[%s484 + $0x14] sm:$0xf]
        %v1103 = vld [vmem:[%s484 + $0x18] sm:$0xf]
        %v1104 = vld [vmem:[%s484 + $0x1c] sm:$0xf]
        %v1105 = vld [vmem:[%s484 + $0x20] sm:$0xf]
        %v1106 = vld [vmem:[%s484 + $0x24] sm:$0xf]
        %v1107 = vld [vmem:[%s484 + $0x28] sm:$0xf]
        %v1108 = vld [vmem:[%s484 + $0x2c] sm:$0xf]
        %v1109 = vld [vmem:[%s484 + $0x30] sm:$0xf]
        %v1110 = vld [vmem:[%s484 + $0x34] sm:$0xf]
        %v1111 = vld [vmem:[%s484 + $0x38] sm:$0xf]
        %v1112 = vld [vmem:[%s484 + $0x3c] sm:$0xf]
        %v1113 = vld [vmem:[%s564] sm:$0x1]
        %v1115 = vlaneseq
        %v1116 = vshrl.u32 %v1115, 7
        %v1117 = vsub.s32 0, %v1116
        %v1118 = vrot.slane %v1113, %v1117
        %v1136 = vunpack.c.l.b16 %v1097
        %v1137 = vunpack.c.l.b16 %v1098
        %v1138 = vunpack.c.l.b16 %v1099
        %v1139 = vunpack.c.l.b16 %v1100
        %v1140 = vunpack.c.l.b16 %v1101
        %v1141 = vunpack.c.l.b16 %v1102
        %v1142 = vunpack.c.l.b16 %v1103
        %v1143 = vunpack.c.l.b16 %v1104
        %v1144 = vunpack.c.l.b16 %v1105
        %v1145 = vunpack.c.l.b16 %v1106
        %v1146 = vunpack.c.l.b16 %v1107
        %v1147 = vunpack.c.l.b16 %v1108
        %v1148 = vunpack.c.l.b16 %v1109
        %v1149 = vunpack.c.l.b16 %v1110
        %v1150 = vunpack.c.l.b16 %v1111
        %v1151 = vunpack.c.l.b16 %v1112
        %v1152 = vpack.c.b16 %v1137, %v1136
        %v1153 = vpack.c.b16 %v1139, %v1138
        %v1154 = vpack.c.b16 %v1141, %v1140
        %v1155 = vpack.c.b16 %v1143, %v1142
        %v1156 = vpack.c.b16 %v1145, %v1144
        %v1157 = vpack.c.b16 %v1147, %v1146
        %v1158 = vpack.c.b16 %v1149, %v1148
        %v1159 = vpack.c.b16 %v1151, %v1150
        %1168 = vmatprep.subr.bf16.mxu0 0
        %1169 = vmatpush1.bf16.msra.mxu0 %v1159
        %1170 = vmatprep.subr.bf16.mxu0 0
        %1171 = vmatpush1.bf16.msra.mxu0 %v1158
        %1172 = vmatprep.subr.bf16.mxu0 0
        %1173 = vmatpush1.bf16.msra.mxu0 %v1157
        %1174 = vmatprep.subr.bf16.mxu0 0
        %1175 = vmatpush1.bf16.msra.mxu0 %v1156
        %1176 = vmatprep.subr.bf16.mxu0 0
        %1177 = vmatpush1.bf16.msra.mxu0 %v1155
        %1178 = vmatprep.subr.bf16.mxu0 0
        %1179 = vmatpush1.bf16.msra.mxu0 %v1154
        %1180 = vmatprep.subr.bf16.mxu0 0
        %1181 = vmatpush1.bf16.msra.mxu0 %v1153
        %1182 = vmatprep.subr.bf16.mxu0 0
        %1183 = vmatpush1.bf16.msra.mxu0 %v1152
        %1184 = vmatprep.subr.bf16.mxu0 0
        %1185 = vmatpush2.bf16.msra.mxu0 0
        %1186 = vmatprep.subr.bf16.mxu0 0
        %1187 = vmatpush2.bf16.msra.mxu0 0
        %1188 = vmatprep.subr.bf16.mxu0 0
        %1189 = vmatpush2.bf16.msra.mxu0 0
        %1190 = vmatprep.subr.bf16.mxu0 0
        %1191 = vmatpush2.bf16.msra.mxu0 0
        %1192 = vmatprep.subr.bf16.mxu0 0
        %1193 = vmatpush2.bf16.msra.mxu0 0
        %1194 = vmatprep.subr.bf16.mxu0 0
        %1195 = vmatpush2.bf16.msra.mxu0 0
        %1196 = vmatprep.subr.bf16.mxu0 0
        %1197 = vmatpush2.bf16.msra.mxu0 0
        %1198 = vmatprep.subr.bf16.mxu0 0
        %1199 = vmatpush2.bf16.msra.mxu0 0
        %1200 = vmatprep.mubr.bf16.mxu0 0
        %1201 = vmatmul.mubr.bf16.gmra.mxu0 %v1095
        %v1202 = vpop.f32.mrf.mxu0
        %v1203 = vadd.f32 %v1118, %v1202
        %v1204 = vpop.f32.mrf.mxu0
        %v1205 = vpop.f32.mrf.mxu0
        %v1206 = vadd.f32 %v1118, %v1205
        %v1207 = vpop.f32.mrf.mxu0
        %1208 = vmatprep.mubr.bf16.mxu0 0
        %1209 = vmatmul.mubr.bf16.gmra.mxu0 %v1096
        %v1210 = vpop.f32.mrf.mxu0
        %v1211 = vadd.f32 %v1118, %v1210
        %v1212 = vpop.f32.mrf.mxu0
        %v1213 = vpop.f32.mrf.mxu0
        %v1214 = vadd.f32 %v1118, %v1213
        %v1215 = vpop.f32.mrf.mxu0
        %1216 = vdwg.mxu0
        %v1217 = vmax.f32 %v1203, 0.0
        %v1218 = vmax.f32 %v1206, 0.0
        %v1219 = vmax.f32 %v1211, 0.0
        %v1220 = vmax.f32 %v1214, 0.0
        %v1221 = vpack.c.bf16 %v1218, %v1217
        %v1222 = vpack.c.bf16 %v1220, %v1219
        %v1223 = vld [vmem:[%s493] sm:$0xf]
        %v1224 = vld [vmem:[%s493 + $0x4] sm:$0xf]
        %v1225 = vld [vmem:[%s493 + $0x8] sm:$0xf]
        %v1226 = vld [vmem:[%s493 + $0xc] sm:$0xf]
        %v1227 = vld [vmem:[%s493 + $0x10] sm:$0xf]
        %v1228 = vld [vmem:[%s493 + $0x14] sm:$0xf]
        %v1229 = vld [vmem:[%s493 + $0x18] sm:$0xf]
        %v1230 = vld [vmem:[%s493 + $0x1c] sm:$0xf]
        %v1231 = vld [vmem:[%s493 + $0x20] sm:$0xf]
        %v1232 = vld [vmem:[%s493 + $0x24] sm:$0xf]
        %v1233 = vld [vmem:[%s493 + $0x28] sm:$0xf]
        %v1234 = vld [vmem:[%s493 + $0x2c] sm:$0xf]
        %v1235 = vld [vmem:[%s493 + $0x30] sm:$0xf]
        %v1236 = vld [vmem:[%s493 + $0x34] sm:$0xf]
        %v1237 = vld [vmem:[%s493 + $0x38] sm:$0xf]
        %v1238 = vld [vmem:[%s493 + $0x3c] sm:$0xf]
        %v1239 = vld [vmem:[%s567] sm:$0x1]
        %v1241 = vlaneseq
        %v1242 = vshrl.u32 %v1241, 7
        %v1243 = vsub.s32 0, %v1242
        %v1244 = vrot.slane %v1239, %v1243
        %v1262 = vunpack.c.l.b16 %v1223
        %v1263 = vunpack.c.l.b16 %v1224
        %v1264 = vunpack.c.l.b16 %v1225
        %v1265 = vunpack.c.l.b16 %v1226
        %v1266 = vunpack.c.l.b16 %v1227
        %v1267 = vunpack.c.l.b16 %v1228
        %v1268 = vunpack.c.l.b16 %v1229
        %v1269 = vunpack.c.l.b16 %v1230
        %v1270 = vunpack.c.l.b16 %v1231
        %v1271 = vunpack.c.l.b16 %v1232
        %v1272 = vunpack.c.l.b16 %v1233
        %v1273 = vunpack.c.l.b16 %v1234
        %v1274 = vunpack.c.l.b16 %v1235
        %v1275 = vunpack.c.l.b16 %v1236
        %v1276 = vunpack.c.l.b16 %v1237
        %v1277 = vunpack.c.l.b16 %v1238
        %v1278 = vpack.c.b16 %v1263, %v1262
        %v1279 = vpack.c.b16 %v1265, %v1264
        %v1280 = vpack.c.b16 %v1267, %v1266
        %v1281 = vpack.c.b16 %v1269, %v1268
        %v1282 = vpack.c.b16 %v1271, %v1270
        %v1283 = vpack.c.b16 %v1273, %v1272
        %v1284 = vpack.c.b16 %v1275, %v1274
        %v1285 = vpack.c.b16 %v1277, %v1276
        %1294 = vmatprep.subr.bf16.mxu0 0
        %1295 = vmatpush1.bf16.msra.mxu0 %v1285
        %1296 = vmatprep.subr.bf16.mxu0 0
        %1297 = vmatpush1.bf16.msra.mxu0 %v1284
        %1298 = vmatprep.subr.bf16.mxu0 0
        %1299 = vmatpush1.bf16.msra.mxu0 %v1283
        %1300 = vmatprep.subr.bf16.mxu0 0
        %1301 = vmatpush1.bf16.msra.mxu0 %v1282
        %1302 = vmatprep.subr.bf16.mxu0 0
        %1303 = vmatpush1.bf16.msra.mxu0 %v1281
        %1304 = vmatprep.subr.bf16.mxu0 0
        %1305 = vmatpush1.bf16.msra.mxu0 %v1280
        %1306 = vmatprep.subr.bf16.mxu0 0
        %1307 = vmatpush1.bf16.msra.mxu0 %v1279
        %1308 = vmatprep.subr.bf16.mxu0 0
        %1309 = vmatpush1.bf16.msra.mxu0 %v1278
        %1310 = vmatprep.subr.bf16.mxu0 0
        %1311 = vmatpush2.bf16.msra.mxu0 0
        %1312 = vmatprep.subr.bf16.mxu0 0
        %1313 = vmatpush2.bf16.msra.mxu0 0
        %1314 = vmatprep.subr.bf16.mxu0 0
        %1315 = vmatpush2.bf16.msra.mxu0 0
        %1316 = vmatprep.subr.bf16.mxu0 0
        %1317 = vmatpush2.bf16.msra.mxu0 0
        %1318 = vmatprep.subr.bf16.mxu0 0
        %1319 = vmatpush2.bf16.msra.mxu0 0
        %1320 = vmatprep.subr.bf16.mxu0 0
        %1321 = vmatpush2.bf16.msra.mxu0 0
        %1322 = vmatprep.subr.bf16.mxu0 0
        %1323 = vmatpush2.bf16.msra.mxu0 0
        %1324 = vmatprep.subr.bf16.mxu0 0
        %1325 = vmatpush2.bf16.msra.mxu0 0
        %1326 = vmatprep.mubr.bf16.mxu0 0
        %1327 = vmatmul.mubr.bf16.gmra.mxu0 %v1221
        %v1328 = vpop.f32.mrf.mxu0
        %v1329 = vadd.f32 %v1244, %v1328
        %v1330 = vpop.f32.mrf.mxu0
        %v1331 = vpop.f32.mrf.mxu0
        %v1332 = vadd.f32 %v1244, %v1331
        %v1333 = vpop.f32.mrf.mxu0
        %1334 = vmatprep.mubr.bf16.mxu0 0
        %1335 = vmatmul.mubr.bf16.gmra.mxu0 %v1222
        %v1336 = vpop.f32.mrf.mxu0
        %v1337 = vadd.f32 %v1244, %v1336
        %v1338 = vpop.f32.mrf.mxu0
        %v1339 = vpop.f32.mrf.mxu0
        %v1340 = vadd.f32 %v1244, %v1339
        %v1341 = vpop.f32.mrf.mxu0
        %1342 = vdwg.mxu0
        %v1343 = vadd.f32 %v1329, %v1332
        %v1344 = vadd.f32 %v1343, %v1337
        %v1345 = vadd.f32 %v1344, %v1340
        %v1346 = vrot.slane %v1345, 4
        %v1347 = vadd.f32 %v1345, %v1346
        %v1348 = vrot.slane %v1347, 2
        %v1349 = vadd.f32 %v1347, %v1348
        %v1350 = vrot.slane %v1349, 1
        %v1351 = vadd.f32 %v1349, %v1350
        %v1352 = vmul.f32 %v1351, 0.03125
        %v1353 = vmul.f32 %v1329, %v1329
        %v1354 = vmul.f32 %v1332, %v1332
        %v1355 = vmul.f32 %v1337, %v1337
        %v1356 = vmul.f32 %v1340, %v1340
        %v1357 = vadd.f32 %v1353, %v1354
        %v1358 = vadd.f32 %v1357, %v1355
        %v1359 = vadd.f32 %v1358, %v1356
        %v1360 = vrot.slane %v1359, 4
        %v1361 = vadd.f32 %v1359, %v1360
        %v1362 = vrot.slane %v1361, 2
        %v1363 = vadd.f32 %v1361, %v1362
        %v1364 = vrot.slane %v1363, 1
        %v1365 = vadd.f32 %v1363, %v1364
        %v1366 = vmul.f32 %v1365, 0.03125
        %v1367 = vmul.f32 %v1352, %v1352
        %v1368 = vsub.f32 %v1366, %v1367
        %v1369 = vmax.f32 %v1368, 0.0
        %v1370 = vld [vmem:[%s570] sm:$0x1]
        %v1371 = vadd.f32 %v1369, 1e-05
        %v1372 = vrsqrt.pop %v1371
        %v1373 = vmul.f32 %v1370, %v1372
        %v1374 = vld [vmem:[%s573] sm:$0x1]
        %v1375 = vmul.f32 %v1352, %v1373
        %v1376 = vsub.f32 %v1374, %v1375
        %v1378 = vlaneseq
        %v1379 = vshrl.u32 %v1378, 7
        %v1380 = vsub.s32 0, %v1379
        %v1381 = vrot.slane %v1373, %v1380
        %v1383 = vmul.f32 %v1329, %v1381
        %v1384 = vmul.f32 %v1332, %v1381
        %v1385 = vmul.f32 %v1337, %v1381
        %v1386 = vmul.f32 %v1340, %v1381
        %v1388 = vlaneseq
        %v1389 = vshrl.u32 %v1388, 7
        %v1390 = vsub.s32 0, %v1389
        %v1391 = vrot.slane %v1376, %v1390
        %v1393 = vadd.f32 %v1383, %v1391
        %v1394 = vadd.f32 %v1384, %v1391
        %v1395 = vadd.f32 %v1385, %v1391
        %v1396 = vadd.f32 %v1386, %v1391
        %v1397 = vmax.f32 %v1393, 0.0
        %v1398 = vmax.f32 %v1394, 0.0
        %v1399 = vmax.f32 %v1395, 0.0
        %v1400 = vmax.f32 %v1396, 0.0
        %1401 = vst [vmem:[#allocation11] sm:$0xff] %v1397
        %1402 = vst [vmem:[#allocation11 + $0x8] sm:$0xff] %v1398
        %1403 = vst [vmem:[#allocation11 + $0x10] sm:$0xff] %v1399
        %1404 = vst [vmem:[#allocation11 + $0x18] sm:$0xff] %v1400
        // Predicated region
        $region89: #{tpu_custom_call.1} parent=67 // pred_check
          %p1405 = pneg %p331
        $region90: #{tpu_custom_call.1} parent=67 // pred_check_branch
          %1407 = sbr.rel (%p1405) target = $region92
        $region91: #{tpu_custom_call.1} parent=67 // pred_region
          %s1409 = ssub.s32 512, 512
          %1410 = vsyncadd [#allocation6], %s1409
          %s1411 = sshll.u32 [#allocation11], 4
          %s1412 = int_to_ptr.vmem [resolvable:$true] %s1411
          %1417 = dma.vmem_to_hbm [thread:$0]  %s1412, 512, %s12, [#allocation6], 128, 128, 8
        $region92: #{tpu_custom_call.1} parent=67 // pred_fallthru
          _
        // Predicated region
        $region93: #{tpu_custom_call.1} parent=67 // pred_check
          %p1418 = pneg %p331
        $region94: #{tpu_custom_call.1} parent=67 // pred_check_branch
          %1420 = sbr.rel (%p1418) target = $region96
        $region95: #{tpu_custom_call.1} parent=67 // pred_region
          %1421 = dma.done [#allocation6], 512
        $region96: #{tpu_custom_call.1} parent=67 // pred_fallthru
          _
      $region68: #{tpu_custom_call.1} parent=5 // pred_fallthru
        _
      %p1422 = scmp.le.s32.totalorder 2, %s21
      // Predicated region
      $region97: #{tpu_custom_call.1} parent=5 // pred_check
        %p1423 = pneg %p1422
      $region98: #{tpu_custom_call.1} parent=5 // pred_check_branch
        %1425 = sbr.rel (%p1423) target = $region100
      $region99: #{tpu_custom_call.1} parent=5 // pred_region
        %s1426 = ssub.s32 %s21, 2
      $region100: #{tpu_custom_call.1} parent=5 // pred_fallthru
        _
    $region6: #{tpu_custom_call.1} parent=1 // loop_footer
      %s25 = sadd.s32 1, %s21
    $region7: #{tpu_custom_call.1} parent=1 // loop_footer_branch
      %20 = sbr.rel target = $region3
    $region8: #{tpu_custom_call.1} parent=1 // loop_exit
      _
    %1427 = vsyncpa [#allocation5], 1
    %s1428 = scalar_lea.sflag [#allocation5], 1
    %1429 = vsyncpa %s1428, 1
    %1430 = vsyncpa [#allocation8], 1
    %1431 = vsyncpa [#allocation6], 1
    %s1432 = scalar_lea.sflag [#allocation6], 1
    %1433 = vsyncpa %s1432, 1

</llo_original>
